<compile_context>
chip_gen: v6e
topology: v6e:2x2x1
jax: 0.10.0
libtpu: 0.0.40
codegen_flags: <defaults>
</compile_context>

<pallas_src>
import functools
import math

import jax
import jax.numpy as jnp
from jax.experimental import pallas as pl
from jax.experimental.pallas import tpu as pltpu

# ---------------- synthetic (small) OpenCLIP text config ----------------
VOCAB = 64        # real ViT-H-14: 49408
D_MODEL = 32      # real: 1024
N_HEADS = 4       # real: 16
HEAD_DIM = D_MODEL // N_HEADS
MLP_DIM = 4 * D_MODEL
N_LAYERS = 2      # real: 24
MAX_LEN = 8       # real: 77 (padded to 128 for the real config via SEQ_PAD)
LN_EPS = 1e-5
LAYER = "last"    # 'last' -> layer_idx=0 (run all blocks); 'penultimate' -> skip last

SEQ_PAD = 8       # pad S to this multiple (use 128 for the real 77-token config)
MLP_CHUNK = 1024  # chunk width over MLP_DIM (1 chunk at toy size; 4 at real 4096)


def _gelu_tanh(x):
    # tanh-approx GELU (EUP tanh); |diff| vs exact erf GELU < ~3e-4 absolute.
    c = math.sqrt(2.0 / math.pi)
    return 0.5 * x * (1.0 + jnp.tanh(c * (x + 0.044715 * x * x * x)))


def _layernorm(x, w, b):
    mu = jnp.mean(x, axis=-1, keepdims=True)
    var = jnp.mean((x - mu) ** 2, axis=-1, keepdims=True)
    return (x - mu) * jax.lax.rsqrt(var + LN_EPS) * w + b


# ---------------- fused transformer kernel ----------------
def _clip_transformer_kernel(
    x_ref,                       # (Bt, S, D) f32 embedded tokens
    ln1w_ref, ln1b_ref,          # (1, 1, D)
    wqkv_ref, bqkv_ref,          # (1, D, 3D) bf16 / (1, 1, 3D) f32
    wout_ref, bout_ref,          # (1, D, D) bf16 / (1, 1, D) f32
    ln2w_ref, ln2b_ref,          # (1, 1, D)
    w1_ref, b1_ref,              # (1, D, 4D) bf16 / (1, 1, 4D) f32
    w2_ref, b2_ref,              # (1, 4D, D) bf16 / (1, 1, D) f32
    lnfw_ref, lnfb_ref,          # (1, D) ln_final
    o_ref,                       # (Bt, S, D) f32 -- resident accumulator + output
    mask_ref,                    # VMEM scratch (S, S) f32 causal mask
    *, bt, s, d, n_heads, mlp_chunk):
    layer = pl.program_id(1)
    n_layers = pl.num_programs(1)
    hd = d // n_heads
    m = bt * s

    # ---- at layer 0: seed the resident output block and build the mask ----
    @pl.when(layer == 0)
    def _():
        o_ref[...] = x_ref[...]
        row = jax.lax.broadcasted_iota(jnp.int32, (s, s), 0)
        col = jax.lax.broadcasted_iota(jnp.int32, (s, s), 1)
        mask_ref[...] = jnp.where(col > row, -1e30, 0.0).astype(jnp.float32)

    x = o_ref[...].reshape(m, d)                      # (M, D) f32

    # ---- attention branch (pre-LN) ----
    h = _layernorm(x, ln1w_ref[0], ln1b_ref[0])
    qkv = jnp.dot(h.astype(jnp.bfloat16), wqkv_ref[0],
                  preferred_element_type=jnp.float32) + bqkv_ref[0]   # (M, 3D) f32
    q = qkv[:, 0:d].reshape(bt, s, d)
    k = qkv[:, d:2 * d].reshape(bt, s, d)
    v = qkv[:, 2 * d:3 * d].reshape(bt, s, d)

    mask = mask_ref[...]                              # (S, S) f32
    scale = 1.0 / math.sqrt(hd)
    heads = []
    for hh in range(n_heads):
        lo = hh * hd
        qh = (q[:, :, lo:lo + hd] * scale).astype(jnp.bfloat16)       # (Bt, S, Hd)
        kh = k[:, :, lo:lo + hd].astype(jnp.bfloat16)
        vh = v[:, :, lo:lo + hd].astype(jnp.bfloat16)
        sc = jnp.einsum('bqd,bkd->bqk', qh, kh,
                        preferred_element_type=jnp.float32)           # (Bt, S, S) f32
        sc = sc + mask[None]
        sc = sc - jnp.max(sc, axis=-1, keepdims=True)
        p = jnp.exp(sc)
        p = p * pl.reciprocal(jnp.sum(p, axis=-1, keepdims=True), approx=True)
        heads.append(jnp.einsum('bqk,bkd->bqd', p.astype(jnp.bfloat16), vh,
                                preferred_element_type=jnp.float32))  # (Bt, S, Hd)
    # heads are lane-contiguous slices -> concat is just sliced stores,
    # then ONE full-K output projection on the MXU.
    attn = jnp.concatenate(heads, axis=-1).reshape(m, d)
    x = x + jnp.dot(attn.astype(jnp.bfloat16), wout_ref[0],
                    preferred_element_type=jnp.float32) + bout_ref[0]

    # ---- MLP branch (pre-LN), chunked along MLP_DIM ----
    h2 = _layernorm(x, ln2w_ref[0], ln2b_ref[0]).astype(jnp.bfloat16)
    mlp_dim = w1_ref.shape[2]
    mlp_out = jnp.zeros((m, d), dtype=jnp.float32)
    for c0 in range(0, mlp_dim, mlp_chunk):
        c1 = min(c0 + mlp_chunk, mlp_dim)
        g = jnp.dot(h2, w1_ref[0, :, c0:c1],
                    preferred_element_type=jnp.float32) + b1_ref[0, :, c0:c1]
        g = _gelu_tanh(g)
        mlp_out = mlp_out + jnp.dot(g.astype(jnp.bfloat16), w2_ref[0, c0:c1, :],
                                    preferred_element_type=jnp.float32)
    x = x + mlp_out + b2_ref[0]

    # ---- store back into the resident output block; fold ln_final at the end ----
    @pl.when(layer < n_layers - 1)
    def _():
        o_ref[...] = x.reshape(bt, s, d)

    @pl.when(layer == n_layers - 1)
    def _():
        y = _layernorm(x, lnfw_ref[...], lnfb_ref[...])
        o_ref[...] = y.reshape(bt, s, d)


# ---------------- wrapper ----------------
_WEIGHT_NAMES = ["ln1w", "ln1b", "wqkv", "bqkv", "wout", "bout",
                 "ln2w", "ln2b", "w1", "b1", "w2", "b2"]
_MATMUL_WEIGHTS = {"wqkv", "wout", "w1", "w2"}


def _layer_spec(a):
    nd = a.ndim
    return pl.BlockSpec((1,) + a.shape[1:], lambda b, l: (l,) + (0,) * (nd - 1))


def _full_spec(a):
    nd = a.ndim
    return pl.BlockSpec(a.shape, lambda b, l: (0,) * nd)


def _default_batch_tile(B):
    # v7x has 2 TensorCores: keep >= 2 parallel grid steps when possible so
    # both get work.  Otherwise use the whole batch so M = bt*S is as large as
    # possible (amortizes per-tile weight streaming, the dominant cost on v5e).
    if B >= 2 and B % 2 == 0:
        return B // 2
    return B


def clip_text_transformer(x_emb, stacked, lnf_w, lnf_b, *, batch_tile=None,
                          vmem_limit_bytes=48 * 1024 * 1024):
    """x_emb: (B, S, D) f32 embedded tokens.  Runs all stacked layers + ln_final."""
    B, S, D = x_emb.shape
    L = stacked["ln1w"].shape[0]
    mlp_dim = stacked["w1"].shape[2]
    bt = _default_batch_tile(B) if batch_tile is None else batch_tile
    assert B % bt == 0

    x_spec = pl.BlockSpec((bt, S, D), lambda b, l: (b, 0, 0))
    weights = [stacked[n] for n in _WEIGHT_NAMES]
    in_specs = ([x_spec]
                + [_layer_spec(w) for w in weights]
                + [_full_spec(lnf_w), _full_spec(lnf_b)])

    kernel = functools.partial(_clip_transformer_kernel,
                               bt=bt, s=S, d=D, n_heads=N_HEADS,
                               mlp_chunk=min(MLP_CHUNK, mlp_dim))
    return pl.pallas_call(
        kernel,
        out_shape=jax.ShapeDtypeStruct((B, S, D), jnp.float32),
        grid=(B // bt, L),
        in_specs=in_specs,
        out_specs=x_spec,
        scratch_shapes=[pltpu.VMEM((S, S), jnp.float32)],
        compiler_params=pltpu.CompilerParams(
            dimension_semantics=("parallel", "arbitrary"),
            vmem_limit_bytes=vmem_limit_bytes,
        ),
    )(x_emb, *weights, lnf_w, lnf_b)


def _stack_blocks(blocks, n_run):
    """Stack per-layer params along a leading layer dim; matmul weights -> bf16."""
    stacked = {}
    for name in _WEIGHT_NAMES:
        arr = jnp.stack([blocks[i][name] for i in range(n_run)], axis=0)
        if name in _MATMUL_WEIGHTS:
            arr = arr.astype(jnp.bfloat16)
        stacked[name] = arr
    return stacked


def frozen_openclip_embedder_forward(tokens, params, layer=LAYER, batch_tile=None):
    """tokens: int32 (B, MAX_LEN). Returns (B, MAX_LEN, D_MODEL) float32."""
    B, S = tokens.shape
    x = params["token_embedding"][tokens] + params["positional_embedding"][None, :S, :]
    x = x.astype(jnp.float32)
    # Pad seq to a lane/sublane-friendly multiple (128 for the real 77-token
    # config).  Zero-pad rows sit after every valid query, so the causal mask
    # keeps them out of valid attention rows; they are sliced off below.
    S_pad = ((S + SEQ_PAD - 1) // SEQ_PAD) * SEQ_PAD
    if S_pad != S:
        x = jnp.pad(x, ((0, 0), (0, S_pad - S), (0, 0)))
    layer_idx = 0 if layer == "last" else 1
    n_run = N_LAYERS - layer_idx
    stacked = _stack_blocks(params["blocks"], n_run)
    z = clip_text_transformer(x, stacked, params["ln_final_w"],
                              params["ln_final_b"], batch_tile=batch_tile)
    return z[:, :S, :]


# ---------------- parameter init ----------------
def init_params(key):
    k_tok, k_pos, k_lnf, *layer_keys = jax.random.split(key, 3 + N_LAYERS)
    std = 0.02
    params = {
        "token_embedding": jax.random.normal(k_tok, (VOCAB, D_MODEL), jnp.float32) * std,
        "positional_embedding": jax.random.normal(k_pos, (MAX_LEN, D_MODEL), jnp.float32) * 0.01,
        "ln_final_w": 1.0 + 0.02 * jax.random.normal(k_lnf, (1, D_MODEL), jnp.float32),
        "ln_final_b": 0.02 * jax.random.normal(jax.random.fold_in(k_lnf, 1),
                                               (1, D_MODEL), jnp.float32),
        "blocks": [],
    }
    for lk in layer_keys:
        ks = jax.random.split(lk, 12)
        blk = dict(
            ln1w=1.0 + 0.02 * jax.random.normal(ks[0], (1, D_MODEL), jnp.float32),
            ln1b=0.02 * jax.random.normal(ks[1], (1, D_MODEL), jnp.float32),
            # stored transposed so x @ W is a plain matmul (matches W^T x of torch Linear)
            wqkv=(jax.random.normal(ks[2], (3 * D_MODEL, D_MODEL), jnp.float32) * std).T,
            bqkv=0.02 * jax.random.normal(ks[3], (1, 3 * D_MODEL), jnp.float32),
            wout=(jax.random.normal(ks[4], (D_MODEL, D_MODEL), jnp.float32) * std).T,
            bout=0.02 * jax.random.normal(ks[5], (1, D_MODEL), jnp.float32),
            ln2w=1.0 + 0.02 * jax.random.normal(ks[6], (1, D_MODEL), jnp.float32),
            ln2b=0.02 * jax.random.normal(ks[7], (1, D_MODEL), jnp.float32),
            w1=(jax.random.normal(ks[8], (MLP_DIM, D_MODEL), jnp.float32) * std).T,
            b1=0.02 * jax.random.normal(ks[9], (1, MLP_DIM), jnp.float32),
            w2=(jax.random.normal(ks[10], (D_MODEL, MLP_DIM), jnp.float32) * std).T,
            b2=0.02 * jax.random.normal(ks[11], (1, D_MODEL), jnp.float32),
        )
        params["blocks"].append(blk)
    return params


# ---------------- pure-JAX f32 reference (module semantics) ----------------
def _reference_forward(tokens, params, layer=LAYER):
    from jax.scipy.special import erf
    x = params["token_embedding"][tokens] + params["positional_embedding"][None, :, :]
    S = tokens.shape[1]
    mask = jnp.where(jnp.arange(S)[None, :] > jnp.arange(S)[:, None], -jnp.inf, 0.0)

    def ln(x, w, b):
        mu = x.mean(-1, keepdims=True)
        var = ((x - mu) ** 2).mean(-1, keepdims=True)
        return (x - mu) / jnp.sqrt(var + LN_EPS) * w + b

    layer_idx = 0 if layer == "last" else 1
    for blk in params["blocks"][:N_LAYERS - layer_idx]:
        h = ln(x, blk["ln1w"], blk["ln1b"])
        qkv = h @ blk["wqkv"] + blk["bqkv"]
        q, k, v = jnp.split(qkv, 3, axis=-1)
        B, Sq, D = q.shape
        q = q.reshape(B, Sq, N_HEADS, HEAD_DIM).transpose(0, 2, 1, 3)
        k = k.reshape(B, Sq, N_HEADS, HEAD_DIM).transpose(0, 2, 1, 3)
        v = v.reshape(B, Sq, N_HEADS, HEAD_DIM).transpose(0, 2, 1, 3)
        sc = (q @ jnp.swapaxes(k, -1, -2)) / math.sqrt(HEAD_DIM) + mask
        p = jax.nn.softmax(sc, axis=-1)
        o = (p @ v).transpose(0, 2, 1, 3).reshape(B, Sq, D)
        x = x + o @ blk["wout"] + blk["bout"]
        h2 = ln(x, blk["ln2w"], blk["ln2b"])
        h2 = h2 @ blk["w1"] + blk["b1"]
        h2 = 0.5 * h2 * (1.0 + erf(h2 / math.sqrt(2.0)))   # exact GELU
        x = x + h2 @ blk["w2"] + blk["b2"]
    return ln(x, params["ln_final_w"], params["ln_final_b"])


if __name__ == "__main__":
    key = jax.random.PRNGKey(0)
    kp, kt = jax.random.split(key)
    params = init_params(kp)
    B = 2
    tokens = jax.random.randint(kt, (B, MAX_LEN), 0, VOCAB, dtype=jnp.int32)

    z = frozen_openclip_embedder_forward(tokens, params, layer=LAYER)
    z = jax.block_until_ready(z)
    assert z.shape == (B, MAX_LEN, D_MODEL) and z.dtype == jnp.float32
    assert bool(jnp.all(jnp.isfinite(z)))

    z_ref = _reference_forward(tokens, params, layer=LAYER)
    err = float(jnp.max(jnp.abs(z - z_ref)))
    assert err < 1e-1, f"max abs err vs f32 reference too large: {err}"
    print("KERNEL_OK")
</pallas_src>

<mosaic_0001>
module attributes {stable_mosaic.version = 11 : i64} {
  func.func @_clip_transformer_kernel(%arg0: i32, %arg1: i32, %arg2: memref<1x8x32xf32, #tpu.memory_space<vmem>>, %arg3: memref<1x1x32xf32, #tpu.memory_space<vmem>>, %arg4: memref<1x1x32xf32, #tpu.memory_space<vmem>>, %arg5: memref<1x32x96xbf16, #tpu.memory_space<vmem>>, %arg6: memref<1x1x96xf32, #tpu.memory_space<vmem>>, %arg7: memref<1x32x32xbf16, #tpu.memory_space<vmem>>, %arg8: memref<1x1x32xf32, #tpu.memory_space<vmem>>, %arg9: memref<1x1x32xf32, #tpu.memory_space<vmem>>, %arg10: memref<1x1x32xf32, #tpu.memory_space<vmem>>, %arg11: memref<1x32x128xbf16, #tpu.memory_space<vmem>>, %arg12: memref<1x1x128xf32, #tpu.memory_space<vmem>>, %arg13: memref<1x128x32xbf16, #tpu.memory_space<vmem>>, %arg14: memref<1x1x32xf32, #tpu.memory_space<vmem>>, %arg15: memref<1x32xf32, #tpu.memory_space<vmem>>, %arg16: memref<1x32xf32, #tpu.memory_space<vmem>>, %arg17: memref<1x8x32xf32, #tpu.memory_space<vmem>>, %arg18: memref<8x8xf32, #tpu.memory_space<vmem>>) attributes {dimension_semantics = [#tpu.dimension_semantics<parallel>, #tpu.dimension_semantics<arbitrary>], iteration_bounds = array<i64: 2, 2>, scalar_prefetch = 0 : i64, scratch_operands = 1 : i64, tpu.core_type = #tpu.core_type<tc>, window_params = [{transform_indices = @transform_0, window_bounds = array<i64: 1, 8, 32>}, {transform_indices = @transform_1, window_bounds = array<i64: 1, 1, 32>}, {transform_indices = @transform_2, window_bounds = array<i64: 1, 1, 32>}, {transform_indices = @transform_3, window_bounds = array<i64: 1, 32, 96>}, {transform_indices = @transform_4, window_bounds = array<i64: 1, 1, 96>}, {transform_indices = @transform_5, window_bounds = array<i64: 1, 32, 32>}, {transform_indices = @transform_6, window_bounds = array<i64: 1, 1, 32>}, {transform_indices = @transform_7, window_bounds = array<i64: 1, 1, 32>}, {transform_indices = @transform_8, window_bounds = array<i64: 1, 1, 32>}, {transform_indices = @transform_9, window_bounds = array<i64: 1, 32, 128>}, {transform_indices = @transform_10, window_bounds = array<i64: 1, 1, 128>}, {transform_indices = @transform_11, window_bounds = array<i64: 1, 128, 32>}, {transform_indices = @transform_12, window_bounds = array<i64: 1, 1, 32>}, {pipeline_mode = #tpu.pipeline_mode<synchronous>, transform_indices = @transform_13, window_bounds = array<i64: 1, 32>}, {pipeline_mode = #tpu.pipeline_mode<synchronous>, transform_indices = @transform_14, window_bounds = array<i64: 1, 32>}, {transform_indices = @transform_15, window_bounds = array<i64: 1, 8, 32>}]} {
    %c0_i32 = arith.constant 0 : i32
    %0 = arith.cmpi eq, %arg1, %c0_i32 : i32
    %1 = arith.extui %0 : i1 to i32
    %c0_i32_0 = arith.constant 0 : i32
    %2 = arith.cmpi ne, %1, %c0_i32_0 : i32
    scf.if %2 {
      %c0_82 = arith.constant 0 : index
      %c0_83 = arith.constant 0 : index
      %c0_84 = arith.constant 0 : index
      %213 = vector.load %arg2[%c0_82, %c0_83, %c0_84] : memref<1x8x32xf32, #tpu.memory_space<vmem>>, vector<1x8x32xf32>
      %c0_85 = arith.constant 0 : index
      %c0_86 = arith.constant 0 : index
      %c0_87 = arith.constant 0 : index
      %214 = vector.load %arg17[%c0_85, %c0_86, %c0_87] : memref<1x8x32xf32, #tpu.memory_space<vmem>>, vector<1x8x32xf32>
      tpu.vector_store %arg17[%c0_85, %c0_86, %c0_87], %213 {strides = array<i32>} : memref<1x8x32xf32, #tpu.memory_space<vmem>>, vector<1x8x32xf32>,
      %215 = tpu.iota {dimensions = array<i32: 0>} : vector<8x8xi32>
      %216 = tpu.iota {dimensions = array<i32: 1>} : vector<8x8xi32>
      %217 = arith.cmpi sgt, %216, %215 : vector<8x8xi32>
      %cst_88 = arith.constant -1.000000e+30 : f32
      %cst_89 = arith.constant 0.000000e+00 : f32
      %218 = vector.broadcast %cst_88 : f32 to vector<8x8xf32>
      %219 = vector.broadcast %cst_89 : f32 to vector<8x8xf32>
      %220 = arith.select %217, %218, %219 : vector<8x8xi1>, vector<8x8xf32>
      %c0_90 = arith.constant 0 : index
      %c0_91 = arith.constant 0 : index
      %221 = vector.load %arg18[%c0_90, %c0_91] : memref<8x8xf32, #tpu.memory_space<vmem>>, vector<8x8xf32>
      tpu.vector_store %arg18[%c0_90, %c0_91], %220 {strides = array<i32>} : memref<8x8xf32, #tpu.memory_space<vmem>>, vector<8x8xf32>,
    } else {
    }
    %c0 = arith.constant 0 : index
    %c0_1 = arith.constant 0 : index
    %c0_2 = arith.constant 0 : index
    %3 = vector.load %arg17[%c0, %c0_1, %c0_2] : memref<1x8x32xf32, #tpu.memory_space<vmem>>, vector<1x8x32xf32>
    %4 = vector.shape_cast %3 : vector<1x8x32xf32> to vector<8x32xf32>
    %c0_3 = arith.constant 0 : index
    %c0_4 = arith.constant 0 : index
    %c0_5 = arith.constant 0 : index
    %5 = vector.load %arg3[%c0_3, %c0_4, %c0_5] : memref<1x1x32xf32, #tpu.memory_space<vmem>>, vector<1x1x32xf32>
    %6 = vector.shape_cast %5 : vector<1x1x32xf32> to vector<1x32xf32>
    %c0_6 = arith.constant 0 : index
    %c0_7 = arith.constant 0 : index
    %c0_8 = arith.constant 0 : index
    %7 = vector.load %arg4[%c0_6, %c0_7, %c0_8] : memref<1x1x32xf32, #tpu.memory_space<vmem>>, vector<1x1x32xf32>
    %8 = vector.shape_cast %7 : vector<1x1x32xf32> to vector<1x32xf32>
    %cst = arith.constant dense<0.000000e+00> : vector<8xf32>
    %9 = vector.multi_reduction <add>, %4, %cst [1] : vector<8x32xf32> to vector<8xf32>
    %10 = vector.shape_cast %9 : vector<8xf32> to vector<8x1xf32>
    %cst_9 = arith.constant 3.200000e+01 : f32
    %11 = vector.broadcast %cst_9 : f32 to vector<8x1xf32>
    %12 = arith.divf %10, %11 : vector<8x1xf32>
    %13 = vector.broadcast %12 : vector<8x1xf32> to vector<8x32xf32>
    %14 = arith.subf %4, %13 : vector<8x32xf32>
    %15 = arith.mulf %14, %14 : vector<8x32xf32>
    %cst_10 = arith.constant dense<0.000000e+00> : vector<8xf32>
    %16 = vector.multi_reduction <add>, %15, %cst_10 [1] : vector<8x32xf32> to vector<8xf32>
    %17 = vector.shape_cast %16 : vector<8xf32> to vector<8x1xf32>
    %cst_11 = arith.constant 3.200000e+01 : f32
    %18 = vector.broadcast %cst_11 : f32 to vector<8x1xf32>
    %19 = arith.divf %17, %18 : vector<8x1xf32>
    %20 = vector.broadcast %12 : vector<8x1xf32> to vector<8x32xf32>
    %21 = arith.subf %4, %20 : vector<8x32xf32>
    %cst_12 = arith.constant 9.99999974E-6 : f32
    %22 = vector.broadcast %cst_12 : f32 to vector<8x1xf32>
    %23 = arith.addf %19, %22 : vector<8x1xf32>
    %24 = math.rsqrt %23 : vector<8x1xf32>
    %25 = vector.broadcast %24 : vector<8x1xf32> to vector<8x32xf32>
    %26 = arith.mulf %21, %25 : vector<8x32xf32>
    %27 = vector.broadcast %6 : vector<1x32xf32> to vector<8x32xf32>
    %28 = arith.mulf %26, %27 : vector<8x32xf32>
    %29 = vector.broadcast %8 : vector<1x32xf32> to vector<8x32xf32>
    %30 = arith.addf %28, %29 : vector<8x32xf32>
    %31 = arith.truncf %30 : vector<8x32xf32> to vector<8x32xbf16>
    %c0_13 = arith.constant 0 : index
    %c0_14 = arith.constant 0 : index
    %c0_15 = arith.constant 0 : index
    %32 = vector.load %arg5[%c0_13, %c0_14, %c0_15] : memref<1x32x96xbf16, #tpu.memory_space<vmem>>, vector<1x32x96xbf16>
    %33 = vector.shape_cast %32 : vector<1x32x96xbf16> to vector<32x96xbf16>
    %cst_16 = arith.constant dense<0.000000e+00> : vector<8x96xf32>
    %34 = tpu.matmul %31, %33, %cst_16 {dimension_numbers = #tpu.dot_dimension_numbers<[1], [0], [0], [1], [0, 0, 1, 1], [], []>} : vector<8x32xbf16>, vector<32x96xbf16>, vector<8x96xf32> -> vector<8x96xf32>
    %c0_17 = arith.constant 0 : index
    %c0_18 = arith.constant 0 : index
    %c0_19 = arith.constant 0 : index
    %35 = vector.load %arg6[%c0_17, %c0_18, %c0_19] : memref<1x1x96xf32, #tpu.memory_space<vmem>>, vector<1x1x96xf32>
    %36 = vector.shape_cast %35 : vector<1x1x96xf32> to vector<1x96xf32>
    %37 = vector.broadcast %36 : vector<1x96xf32> to vector<8x96xf32>
    %38 = arith.addf %34, %37 : vector<8x96xf32>
    %39 = vector.extract_strided_slice %38 {offsets = [0, 0], sizes = [8, 32], strides = [1, 1]} : vector<8x96xf32> to vector<8x32xf32>
    %40 = vector.shape_cast %39 : vector<8x32xf32> to vector<1x8x32xf32>
    %41 = vector.extract_strided_slice %38 {offsets = [0, 32], sizes = [8, 32], strides = [1, 1]} : vector<8x96xf32> to vector<8x32xf32>
    %42 = vector.shape_cast %41 : vector<8x32xf32> to vector<1x8x32xf32>
    %43 = vector.extract_strided_slice %38 {offsets = [0, 64], sizes = [8, 32], strides = [1, 1]} : vector<8x96xf32> to vector<8x32xf32>
    %44 = vector.shape_cast %43 : vector<8x32xf32> to vector<1x8x32xf32>
    %c0_20 = arith.constant 0 : index
    %c0_21 = arith.constant 0 : index
    %45 = vector.load %arg18[%c0_20, %c0_21] : memref<8x8xf32, #tpu.memory_space<vmem>>, vector<8x8xf32>
    %46 = vector.extract_strided_slice %40 {offsets = [0, 0, 0], sizes = [1, 8, 8], strides = [1, 1, 1]} : vector<1x8x32xf32> to vector<1x8x8xf32>
    %cst_22 = arith.constant 0.353553385 : f32
    %47 = vector.broadcast %cst_22 : f32 to vector<1x8x8xf32>
    %48 = arith.mulf %46, %47 : vector<1x8x8xf32>
    %49 = arith.truncf %48 : vector<1x8x8xf32> to vector<1x8x8xbf16>
    %50 = vector.extract_strided_slice %42 {offsets = [0, 0, 0], sizes = [1, 8, 8], strides = [1, 1, 1]} : vector<1x8x32xf32> to vector<1x8x8xf32>
    %51 = arith.truncf %50 : vector<1x8x8xf32> to vector<1x8x8xbf16>
    %52 = vector.extract_strided_slice %44 {offsets = [0, 0, 0], sizes = [1, 8, 8], strides = [1, 1, 1]} : vector<1x8x32xf32> to vector<1x8x8xf32>
    %53 = arith.truncf %52 : vector<1x8x8xf32> to vector<1x8x8xbf16>
    "tpu.trace_start"() <{level = 10 : i32, message = "bqd,bkd->bqk"}> : () -> ()
    %cst_23 = arith.constant dense<0.000000e+00> : vector<1x8x8xf32>
    %54 = tpu.matmul %49, %51, %cst_23 {dimension_numbers = #tpu.dot_dimension_numbers<[2], [2], [1], [1], [0, 0, 0, 1, 1, 1], [0], [0]>} : vector<1x8x8xbf16>, vector<1x8x8xbf16>, vector<1x8x8xf32> -> vector<1x8x8xf32>
    "tpu.trace_stop"() : () -> ()
    %55 = vector.shape_cast %45 : vector<8x8xf32> to vector<1x8x8xf32>
    %56 = arith.addf %54, %55 : vector<1x8x8xf32>
    %cst_24 = arith.constant dense<0xFF800000> : vector<1x8xf32>
    %57 = vector.multi_reduction <maximumf>, %56, %cst_24 [2] : vector<1x8x8xf32> to vector<1x8xf32>
    %58 = vector.shape_cast %57 : vector<1x8xf32> to vector<1x8x1xf32>
    %59 = vector.broadcast %58 : vector<1x8x1xf32> to vector<1x8x8xf32>
    %60 = arith.subf %56, %59 : vector<1x8x8xf32>
    %61 = math.exp %60 : vector<1x8x8xf32>
    %cst_25 = arith.constant dense<0.000000e+00> : vector<1x8xf32>
    %62 = vector.multi_reduction <add>, %61, %cst_25 [2] : vector<1x8x8xf32> to vector<1x8xf32>
    %63 = vector.shape_cast %62 : vector<1x8xf32> to vector<1x8x1xf32>
    %64 = tpu.reciprocal %63 {approx = true} : vector<1x8x1xf32> -> vector<1x8x1xf32>
    %65 = vector.broadcast %64 : vector<1x8x1xf32> to vector<1x8x8xf32>
    %66 = arith.mulf %61, %65 : vector<1x8x8xf32>
    %67 = arith.truncf %66 : vector<1x8x8xf32> to vector<1x8x8xbf16>
    "tpu.trace_start"() <{level = 10 : i32, message = "bqk,bkd->bqd"}> : () -> ()
    %cst_26 = arith.constant dense<0.000000e+00> : vector<1x8x8xf32>
    %68 = tpu.matmul %67, %53, %cst_26 {dimension_numbers = #tpu.dot_dimension_numbers<[2], [1], [1], [2], [0, 0, 0, 1, 1, 2], [0], [0]>} : vector<1x8x8xbf16>, vector<1x8x8xbf16>, vector<1x8x8xf32> -> vector<1x8x8xf32>
    "tpu.trace_stop"() : () -> ()
    %69 = vector.extract_strided_slice %40 {offsets = [0, 0, 8], sizes = [1, 8, 8], strides = [1, 1, 1]} : vector<1x8x32xf32> to vector<1x8x8xf32>
    %cst_27 = arith.constant 0.353553385 : f32
    %70 = vector.broadcast %cst_27 : f32 to vector<1x8x8xf32>
    %71 = arith.mulf %69, %70 : vector<1x8x8xf32>
    %72 = arith.truncf %71 : vector<1x8x8xf32> to vector<1x8x8xbf16>
    %73 = vector.extract_strided_slice %42 {offsets = [0, 0, 8], sizes = [1, 8, 8], strides = [1, 1, 1]} : vector<1x8x32xf32> to vector<1x8x8xf32>
    %74 = arith.truncf %73 : vector<1x8x8xf32> to vector<1x8x8xbf16>
    %75 = vector.extract_strided_slice %44 {offsets = [0, 0, 8], sizes = [1, 8, 8], strides = [1, 1, 1]} : vector<1x8x32xf32> to vector<1x8x8xf32>
    %76 = arith.truncf %75 : vector<1x8x8xf32> to vector<1x8x8xbf16>
    "tpu.trace_start"() <{level = 10 : i32, message = "bqd,bkd->bqk"}> : () -> ()
    %cst_28 = arith.constant dense<0.000000e+00> : vector<1x8x8xf32>
    %77 = tpu.matmul %72, %74, %cst_28 {dimension_numbers = #tpu.dot_dimension_numbers<[2], [2], [1], [1], [0, 0, 0, 1, 1, 1], [0], [0]>} : vector<1x8x8xbf16>, vector<1x8x8xbf16>, vector<1x8x8xf32> -> vector<1x8x8xf32>
    "tpu.trace_stop"() : () -> ()
    %78 = vector.shape_cast %45 : vector<8x8xf32> to vector<1x8x8xf32>
    %79 = arith.addf %77, %78 : vector<1x8x8xf32>
    %cst_29 = arith.constant dense<0xFF800000> : vector<1x8xf32>
    %80 = vector.multi_reduction <maximumf>, %79, %cst_29 [2] : vector<1x8x8xf32> to vector<1x8xf32>
    %81 = vector.shape_cast %80 : vector<1x8xf32> to vector<1x8x1xf32>
    %82 = vector.broadcast %81 : vector<1x8x1xf32> to vector<1x8x8xf32>
    %83 = arith.subf %79, %82 : vector<1x8x8xf32>
    %84 = math.exp %83 : vector<1x8x8xf32>
    %cst_30 = arith.constant dense<0.000000e+00> : vector<1x8xf32>
    %85 = vector.multi_reduction <add>, %84, %cst_30 [2] : vector<1x8x8xf32> to vector<1x8xf32>
    %86 = vector.shape_cast %85 : vector<1x8xf32> to vector<1x8x1xf32>
    %87 = tpu.reciprocal %86 {approx = true} : vector<1x8x1xf32> -> vector<1x8x1xf32>
    %88 = vector.broadcast %87 : vector<1x8x1xf32> to vector<1x8x8xf32>
    %89 = arith.mulf %84, %88 : vector<1x8x8xf32>
    %90 = arith.truncf %89 : vector<1x8x8xf32> to vector<1x8x8xbf16>
    "tpu.trace_start"() <{level = 10 : i32, message = "bqk,bkd->bqd"}> : () -> ()
    %cst_31 = arith.constant dense<0.000000e+00> : vector<1x8x8xf32>
    %91 = tpu.matmul %90, %76, %cst_31 {dimension_numbers = #tpu.dot_dimension_numbers<[2], [1], [1], [2], [0, 0, 0, 1, 1, 2], [0], [0]>} : vector<1x8x8xbf16>, vector<1x8x8xbf16>, vector<1x8x8xf32> -> vector<1x8x8xf32>
    "tpu.trace_stop"() : () -> ()
    %92 = vector.extract_strided_slice %40 {offsets = [0, 0, 16], sizes = [1, 8, 8], strides = [1, 1, 1]} : vector<1x8x32xf32> to vector<1x8x8xf32>
    %cst_32 = arith.constant 0.353553385 : f32
    %93 = vector.broadcast %cst_32 : f32 to vector<1x8x8xf32>
    %94 = arith.mulf %92, %93 : vector<1x8x8xf32>
    %95 = arith.truncf %94 : vector<1x8x8xf32> to vector<1x8x8xbf16>
    %96 = vector.extract_strided_slice %42 {offsets = [0, 0, 16], sizes = [1, 8, 8], strides = [1, 1, 1]} : vector<1x8x32xf32> to vector<1x8x8xf32>
    %97 = arith.truncf %96 : vector<1x8x8xf32> to vector<1x8x8xbf16>
    %98 = vector.extract_strided_slice %44 {offsets = [0, 0, 16], sizes = [1, 8, 8], strides = [1, 1, 1]} : vector<1x8x32xf32> to vector<1x8x8xf32>
    %99 = arith.truncf %98 : vector<1x8x8xf32> to vector<1x8x8xbf16>
    "tpu.trace_start"() <{level = 10 : i32, message = "bqd,bkd->bqk"}> : () -> ()
    %cst_33 = arith.constant dense<0.000000e+00> : vector<1x8x8xf32>
    %100 = tpu.matmul %95, %97, %cst_33 {dimension_numbers = #tpu.dot_dimension_numbers<[2], [2], [1], [1], [0, 0, 0, 1, 1, 1], [0], [0]>} : vector<1x8x8xbf16>, vector<1x8x8xbf16>, vector<1x8x8xf32> -> vector<1x8x8xf32>
    "tpu.trace_stop"() : () -> ()
    %101 = vector.shape_cast %45 : vector<8x8xf32> to vector<1x8x8xf32>
    %102 = arith.addf %100, %101 : vector<1x8x8xf32>
    %cst_34 = arith.constant dense<0xFF800000> : vector<1x8xf32>
    %103 = vector.multi_reduction <maximumf>, %102, %cst_34 [2] : vector<1x8x8xf32> to vector<1x8xf32>
    %104 = vector.shape_cast %103 : vector<1x8xf32> to vector<1x8x1xf32>
    %105 = vector.broadcast %104 : vector<1x8x1xf32> to vector<1x8x8xf32>
    %106 = arith.subf %102, %105 : vector<1x8x8xf32>
    %107 = math.exp %106 : vector<1x8x8xf32>
    %cst_35 = arith.constant dense<0.000000e+00> : vector<1x8xf32>
    %108 = vector.multi_reduction <add>, %107, %cst_35 [2] : vector<1x8x8xf32> to vector<1x8xf32>
    %109 = vector.shape_cast %108 : vector<1x8xf32> to vector<1x8x1xf32>
    %110 = tpu.reciprocal %109 {approx = true} : vector<1x8x1xf32> -> vector<1x8x1xf32>
    %111 = vector.broadcast %110 : vector<1x8x1xf32> to vector<1x8x8xf32>
    %112 = arith.mulf %107, %111 : vector<1x8x8xf32>
    %113 = arith.truncf %112 : vector<1x8x8xf32> to vector<1x8x8xbf16>
    "tpu.trace_start"() <{level = 10 : i32, message = "bqk,bkd->bqd"}> : () -> ()
    %cst_36 = arith.constant dense<0.000000e+00> : vector<1x8x8xf32>
    %114 = tpu.matmul %113, %99, %cst_36 {dimension_numbers = #tpu.dot_dimension_numbers<[2], [1], [1], [2], [0, 0, 0, 1, 1, 2], [0], [0]>} : vector<1x8x8xbf16>, vector<1x8x8xbf16>, vector<1x8x8xf32> -> vector<1x8x8xf32>
    "tpu.trace_stop"() : () -> ()
    %115 = vector.extract_strided_slice %40 {offsets = [0, 0, 24], sizes = [1, 8, 8], strides = [1, 1, 1]} : vector<1x8x32xf32> to vector<1x8x8xf32>
    %cst_37 = arith.constant 0.353553385 : f32
    %116 = vector.broadcast %cst_37 : f32 to vector<1x8x8xf32>
    %117 = arith.mulf %115, %116 : vector<1x8x8xf32>
    %118 = arith.truncf %117 : vector<1x8x8xf32> to vector<1x8x8xbf16>
    %119 = vector.extract_strided_slice %42 {offsets = [0, 0, 24], sizes = [1, 8, 8], strides = [1, 1, 1]} : vector<1x8x32xf32> to vector<1x8x8xf32>
    %120 = arith.truncf %119 : vector<1x8x8xf32> to vector<1x8x8xbf16>
    %121 = vector.extract_strided_slice %44 {offsets = [0, 0, 24], sizes = [1, 8, 8], strides = [1, 1, 1]} : vector<1x8x32xf32> to vector<1x8x8xf32>
    %122 = arith.truncf %121 : vector<1x8x8xf32> to vector<1x8x8xbf16>
    "tpu.trace_start"() <{level = 10 : i32, message = "bqd,bkd->bqk"}> : () -> ()
    %cst_38 = arith.constant dense<0.000000e+00> : vector<1x8x8xf32>
    %123 = tpu.matmul %118, %120, %cst_38 {dimension_numbers = #tpu.dot_dimension_numbers<[2], [2], [1], [1], [0, 0, 0, 1, 1, 1], [0], [0]>} : vector<1x8x8xbf16>, vector<1x8x8xbf16>, vector<1x8x8xf32> -> vector<1x8x8xf32>
    "tpu.trace_stop"() : () -> ()
    %124 = vector.shape_cast %45 : vector<8x8xf32> to vector<1x8x8xf32>
    %125 = arith.addf %123, %124 : vector<1x8x8xf32>
    %cst_39 = arith.constant dense<0xFF800000> : vector<1x8xf32>
    %126 = vector.multi_reduction <maximumf>, %125, %cst_39 [2] : vector<1x8x8xf32> to vector<1x8xf32>
    %127 = vector.shape_cast %126 : vector<1x8xf32> to vector<1x8x1xf32>
    %128 = vector.broadcast %127 : vector<1x8x1xf32> to vector<1x8x8xf32>
    %129 = arith.subf %125, %128 : vector<1x8x8xf32>
    %130 = math.exp %129 : vector<1x8x8xf32>
    %cst_40 = arith.constant dense<0.000000e+00> : vector<1x8xf32>
    %131 = vector.multi_reduction <add>, %130, %cst_40 [2] : vector<1x8x8xf32> to vector<1x8xf32>
    %132 = vector.shape_cast %131 : vector<1x8xf32> to vector<1x8x1xf32>
    %133 = tpu.reciprocal %132 {approx = true} : vector<1x8x1xf32> -> vector<1x8x1xf32>
    %134 = vector.broadcast %133 : vector<1x8x1xf32> to vector<1x8x8xf32>
    %135 = arith.mulf %130, %134 : vector<1x8x8xf32>
    %136 = arith.truncf %135 : vector<1x8x8xf32> to vector<1x8x8xbf16>
    "tpu.trace_start"() <{level = 10 : i32, message = "bqk,bkd->bqd"}> : () -> ()
    %cst_41 = arith.constant dense<0.000000e+00> : vector<1x8x8xf32>
    %137 = tpu.matmul %136, %122, %cst_41 {dimension_numbers = #tpu.dot_dimension_numbers<[2], [1], [1], [2], [0, 0, 0, 1, 1, 2], [0], [0]>} : vector<1x8x8xbf16>, vector<1x8x8xbf16>, vector<1x8x8xf32> -> vector<1x8x8xf32>
    "tpu.trace_stop"() : () -> ()
    %138 = tpu.concatenate %68, %91, %114, %137 in 2 : vector<1x8x8xf32>, vector<1x8x8xf32>, vector<1x8x8xf32>, vector<1x8x8xf32> -> vector<1x8x32xf32>
    %139 = vector.shape_cast %138 : vector<1x8x32xf32> to vector<8x32xf32>
    %140 = arith.truncf %139 : vector<8x32xf32> to vector<8x32xbf16>
    %c0_42 = arith.constant 0 : index
    %c0_43 = arith.constant 0 : index
    %c0_44 = arith.constant 0 : index
    %141 = vector.load %arg7[%c0_42, %c0_43, %c0_44] : memref<1x32x32xbf16, #tpu.memory_space<vmem>>, vector<1x32x32xbf16>
    %142 = vector.shape_cast %141 : vector<1x32x32xbf16> to vector<32x32xbf16>
    %cst_45 = arith.constant dense<0.000000e+00> : vector<8x32xf32>
    %143 = tpu.matmul %140, %142, %cst_45 {dimension_numbers = #tpu.dot_dimension_numbers<[1], [0], [0], [1], [0, 0, 1, 1], [], []>} : vector<8x32xbf16>, vector<32x32xbf16>, vector<8x32xf32> -> vector<8x32xf32>
    %144 = arith.addf %4, %143 : vector<8x32xf32>
    %c0_46 = arith.constant 0 : index
    %c0_47 = arith.constant 0 : index
    %c0_48 = arith.constant 0 : index
    %145 = vector.load %arg8[%c0_46, %c0_47, %c0_48] : memref<1x1x32xf32, #tpu.memory_space<vmem>>, vector<1x1x32xf32>
    %146 = vector.shape_cast %145 : vector<1x1x32xf32> to vector<1x32xf32>
    %147 = vector.broadcast %146 : vector<1x32xf32> to vector<8x32xf32>
    %148 = arith.addf %144, %147 : vector<8x32xf32>
    %c0_49 = arith.constant 0 : index
    %c0_50 = arith.constant 0 : index
    %c0_51 = arith.constant 0 : index
    %149 = vector.load %arg9[%c0_49, %c0_50, %c0_51] : memref<1x1x32xf32, #tpu.memory_space<vmem>>, vector<1x1x32xf32>
    %150 = vector.shape_cast %149 : vector<1x1x32xf32> to vector<1x32xf32>
    %c0_52 = arith.constant 0 : index
    %c0_53 = arith.constant 0 : index
    %c0_54 = arith.constant 0 : index
    %151 = vector.load %arg10[%c0_52, %c0_53, %c0_54] : memref<1x1x32xf32, #tpu.memory_space<vmem>>, vector<1x1x32xf32>
    %152 = vector.shape_cast %151 : vector<1x1x32xf32> to vector<1x32xf32>
    %cst_55 = arith.constant dense<0.000000e+00> : vector<8xf32>
    %153 = vector.multi_reduction <add>, %148, %cst_55 [1] : vector<8x32xf32> to vector<8xf32>
    %154 = vector.shape_cast %153 : vector<8xf32> to vector<8x1xf32>
    %cst_56 = arith.constant 3.200000e+01 : f32
    %155 = vector.broadcast %cst_56 : f32 to vector<8x1xf32>
    %156 = arith.divf %154, %155 : vector<8x1xf32>
    %157 = vector.broadcast %156 : vector<8x1xf32> to vector<8x32xf32>
    %158 = arith.subf %148, %157 : vector<8x32xf32>
    %159 = arith.mulf %158, %158 : vector<8x32xf32>
    %cst_57 = arith.constant dense<0.000000e+00> : vector<8xf32>
    %160 = vector.multi_reduction <add>, %159, %cst_57 [1] : vector<8x32xf32> to vector<8xf32>
    %161 = vector.shape_cast %160 : vector<8xf32> to vector<8x1xf32>
    %cst_58 = arith.constant 3.200000e+01 : f32
    %162 = vector.broadcast %cst_58 : f32 to vector<8x1xf32>
    %163 = arith.divf %161, %162 : vector<8x1xf32>
    %164 = vector.broadcast %156 : vector<8x1xf32> to vector<8x32xf32>
    %165 = arith.subf %148, %164 : vector<8x32xf32>
    %cst_59 = arith.constant 9.99999974E-6 : f32
    %166 = vector.broadcast %cst_59 : f32 to vector<8x1xf32>
    %167 = arith.addf %163, %166 : vector<8x1xf32>
    %168 = math.rsqrt %167 : vector<8x1xf32>
    %169 = vector.broadcast %168 : vector<8x1xf32> to vector<8x32xf32>
    %170 = arith.mulf %165, %169 : vector<8x32xf32>
    %171 = vector.broadcast %150 : vector<1x32xf32> to vector<8x32xf32>
    %172 = arith.mulf %170, %171 : vector<8x32xf32>
    %173 = vector.broadcast %152 : vector<1x32xf32> to vector<8x32xf32>
    %174 = arith.addf %172, %173 : vector<8x32xf32>
    %175 = arith.truncf %174 : vector<8x32xf32> to vector<8x32xbf16>
    %cst_60 = arith.constant 0.000000e+00 : f32
    %176 = vector.broadcast %cst_60 : f32 to vector<8x32xf32>
    %c0_61 = arith.constant 0 : index
    %c0_62 = arith.constant 0 : index
    %c0_63 = arith.constant 0 : index
    %177 = vector.load %arg11[%c0_61, %c0_62, %c0_63] : memref<1x32x128xbf16, #tpu.memory_space<vmem>>, vector<1x32x128xbf16>
    %178 = vector.shape_cast %177 : vector<1x32x128xbf16> to vector<32x128xbf16>
    %cst_64 = arith.constant dense<0.000000e+00> : vector<8x128xf32>
    %179 = tpu.matmul %175, %178, %cst_64 {dimension_numbers = #tpu.dot_dimension_numbers<[1], [0], [0], [1], [0, 0, 1, 1], [], []>} : vector<8x32xbf16>, vector<32x128xbf16>, vector<8x128xf32> -> vector<8x128xf32>
    %c0_65 = arith.constant 0 : index
    %c0_66 = arith.constant 0 : index
    %c0_67 = arith.constant 0 : index
    %180 = vector.load %arg12[%c0_65, %c0_66, %c0_67] : memref<1x1x128xf32, #tpu.memory_space<vmem>>, vector<1x1x128xf32>
    %181 = vector.shape_cast %180 : vector<1x1x128xf32> to vector<1x128xf32>
    %182 = vector.broadcast %181 : vector<1x128xf32> to vector<8x128xf32>
    %183 = arith.addf %179, %182 : vector<8x128xf32>
    %cst_68 = arith.constant 5.000000e-01 : f32
    %184 = vector.broadcast %cst_68 : f32 to vector<8x128xf32>
    %185 = arith.mulf %184, %183 : vector<8x128xf32>
    %cst_69 = arith.constant 4.471500e-02 : f32
    %186 = vector.broadcast %cst_69 : f32 to vector<8x128xf32>
    %187 = arith.mulf %186, %183 : vector<8x128xf32>
    %188 = arith.mulf %187, %183 : vector<8x128xf32>
    %189 = arith.mulf %188, %183 : vector<8x128xf32>
    %190 = arith.addf %183, %189 : vector<8x128xf32>
    %cst_70 = arith.constant 0.797884583 : f32
    %191 = vector.broadcast %cst_70 : f32 to vector<8x128xf32>
    %192 = arith.mulf %191, %190 : vector<8x128xf32>
    %193 = math.tanh %192 : vector<8x128xf32>
    %cst_71 = arith.constant 1.000000e+00 : f32
    %194 = vector.broadcast %cst_71 : f32 to vector<8x128xf32>
    %195 = arith.addf %194, %193 : vector<8x128xf32>
    %196 = arith.mulf %185, %195 : vector<8x128xf32>
    %197 = arith.truncf %196 : vector<8x128xf32> to vector<8x128xbf16>
    %c0_72 = arith.constant 0 : index
    %c0_73 = arith.constant 0 : index
    %c0_74 = arith.constant 0 : index
    %198 = vector.load %arg13[%c0_72, %c0_73, %c0_74] : memref<1x128x32xbf16, #tpu.memory_space<vmem>>, vector<1x128x32xbf16>
    %199 = vector.shape_cast %198 : vector<1x128x32xbf16> to vector<128x32xbf16>
    %cst_75 = arith.constant dense<0.000000e+00> : vector<8x32xf32>
    %200 = tpu.matmul %197, %199, %cst_75 {dimension_numbers = #tpu.dot_dimension_numbers<[1], [0], [0], [1], [0, 0, 1, 1], [], []>} : vector<8x128xbf16>, vector<128x32xbf16>, vector<8x32xf32> -> vector<8x32xf32>
    %201 = arith.addf %176, %200 : vector<8x32xf32>
    %202 = arith.addf %148, %201 : vector<8x32xf32>
    %c0_76 = arith.constant 0 : index
    %c0_77 = arith.constant 0 : index
    %c0_78 = arith.constant 0 : index
    %203 = vector.load %arg14[%c0_76, %c0_77, %c0_78] : memref<1x1x32xf32, #tpu.memory_space<vmem>>, vector<1x1x32xf32>
    %204 = vector.shape_cast %203 : vector<1x1x32xf32> to vector<1x32xf32>
    %205 = vector.broadcast %204 : vector<1x32xf32> to vector<8x32xf32>
    %206 = arith.addf %202, %205 : vector<8x32xf32>
    %c1_i32 = arith.constant 1 : i32
    %207 = arith.cmpi slt, %arg1, %c1_i32 : i32
    %208 = arith.extui %207 : i1 to i32
    %c0_i32_79 = arith.constant 0 : i32
    %209 = arith.cmpi ne, %208, %c0_i32_79 : i32
    scf.if %209 {
      %213 = vector.shape_cast %206 : vector<8x32xf32> to vector<1x8x32xf32>
      %c0_82 = arith.constant 0 : index
      %c0_83 = arith.constant 0 : index
      %c0_84 = arith.constant 0 : index
      %214 = vector.load %arg17[%c0_82, %c0_83, %c0_84] : memref<1x8x32xf32, #tpu.memory_space<vmem>>, vector<1x8x32xf32>
      tpu.vector_store %arg17[%c0_82, %c0_83, %c0_84], %213 {strides = array<i32>} : memref<1x8x32xf32, #tpu.memory_space<vmem>>, vector<1x8x32xf32>,
    } else {
    }
    %c1_i32_80 = arith.constant 1 : i32
    %210 = arith.cmpi eq, %arg1, %c1_i32_80 : i32
    %211 = arith.extui %210 : i1 to i32
    %c0_i32_81 = arith.constant 0 : i32
    %212 = arith.cmpi ne, %211, %c0_i32_81 : i32
    scf.if %212 {
      %c0_82 = arith.constant 0 : index
      %c0_83 = arith.constant 0 : index
      %213 = vector.load %arg15[%c0_82, %c0_83] : memref<1x32xf32, #tpu.memory_space<vmem>>, vector<1x32xf32>
      %c0_84 = arith.constant 0 : index
      %c0_85 = arith.constant 0 : index
      %214 = vector.load %arg16[%c0_84, %c0_85] : memref<1x32xf32, #tpu.memory_space<vmem>>, vector<1x32xf32>
      %cst_86 = arith.constant dense<0.000000e+00> : vector<8xf32>
      %215 = vector.multi_reduction <add>, %206, %cst_86 [1] : vector<8x32xf32> to vector<8xf32>
      %216 = vector.shape_cast %215 : vector<8xf32> to vector<8x1xf32>
      %cst_87 = arith.constant 3.200000e+01 : f32
      %217 = vector.broadcast %cst_87 : f32 to vector<8x1xf32>
      %218 = arith.divf %216, %217 : vector<8x1xf32>
      %219 = vector.broadcast %218 : vector<8x1xf32> to vector<8x32xf32>
      %220 = arith.subf %206, %219 : vector<8x32xf32>
      %221 = arith.mulf %220, %220 : vector<8x32xf32>
      %cst_88 = arith.constant dense<0.000000e+00> : vector<8xf32>
      %222 = vector.multi_reduction <add>, %221, %cst_88 [1] : vector<8x32xf32> to vector<8xf32>
      %223 = vector.shape_cast %222 : vector<8xf32> to vector<8x1xf32>
      %cst_89 = arith.constant 3.200000e+01 : f32
      %224 = vector.broadcast %cst_89 : f32 to vector<8x1xf32>
      %225 = arith.divf %223, %224 : vector<8x1xf32>
      %226 = vector.broadcast %218 : vector<8x1xf32> to vector<8x32xf32>
      %227 = arith.subf %206, %226 : vector<8x32xf32>
      %cst_90 = arith.constant 9.99999974E-6 : f32
      %228 = vector.broadcast %cst_90 : f32 to vector<8x1xf32>
      %229 = arith.addf %225, %228 : vector<8x1xf32>
      %230 = math.rsqrt %229 : vector<8x1xf32>
      %231 = vector.broadcast %230 : vector<8x1xf32> to vector<8x32xf32>
      %232 = arith.mulf %227, %231 : vector<8x32xf32>
      %233 = vector.broadcast %213 : vector<1x32xf32> to vector<8x32xf32>
      %234 = arith.mulf %232, %233 : vector<8x32xf32>
      %235 = vector.broadcast %214 : vector<1x32xf32> to vector<8x32xf32>
      %236 = arith.addf %234, %235 : vector<8x32xf32>
      %237 = vector.shape_cast %236 : vector<8x32xf32> to vector<1x8x32xf32>
      %c0_91 = arith.constant 0 : index
      %c0_92 = arith.constant 0 : index
      %c0_93 = arith.constant 0 : index
      %238 = vector.load %arg17[%c0_91, %c0_92, %c0_93] : memref<1x8x32xf32, #tpu.memory_space<vmem>>, vector<1x8x32xf32>
      tpu.vector_store %arg17[%c0_91, %c0_92, %c0_93], %237 {strides = array<i32>} : memref<1x8x32xf32, #tpu.memory_space<vmem>>, vector<1x8x32xf32>,
    } else {
    }
    return
  }
  func.func @transform_0(%arg0: i32, %arg1: i32) -> (i32, i32, i32) {
    %c0_i32 = arith.constant 0 : i32
    %c0_i32_0 = arith.constant 0 : i32
    %c0_i32_1 = arith.constant 0 : i32
    return %arg0, %c0_i32, %c0_i32_0 : i32, i32, i32
  }
  func.func @transform_1(%arg0: i32, %arg1: i32) -> (i32, i32, i32) {
    %c0_i32 = arith.constant 0 : i32
    %c0_i32_0 = arith.constant 0 : i32
    %c0_i32_1 = arith.constant 0 : i32
    return %arg1, %c0_i32, %c0_i32_0 : i32, i32, i32
  }
  func.func @transform_2(%arg0: i32, %arg1: i32) -> (i32, i32, i32) {
    %c0_i32 = arith.constant 0 : i32
    %c0_i32_0 = arith.constant 0 : i32
    %c0_i32_1 = arith.constant 0 : i32
    return %arg1, %c0_i32, %c0_i32_0 : i32, i32, i32
  }
  func.func @transform_3(%arg0: i32, %arg1: i32) -> (i32, i32, i32) {
    %c0_i32 = arith.constant 0 : i32
    %c0_i32_0 = arith.constant 0 : i32
    %c0_i32_1 = arith.constant 0 : i32
    return %arg1, %c0_i32, %c0_i32_0 : i32, i32, i32
  }
  func.func @transform_4(%arg0: i32, %arg1: i32) -> (i32, i32, i32) {
    %c0_i32 = arith.constant 0 : i32
    %c0_i32_0 = arith.constant 0 : i32
    %c0_i32_1 = arith.constant 0 : i32
    return %arg1, %c0_i32, %c0_i32_0 : i32, i32, i32
  }
  func.func @transform_5(%arg0: i32, %arg1: i32) -> (i32, i32, i32) {
    %c0_i32 = arith.constant 0 : i32
    %c0_i32_0 = arith.constant 0 : i32
    %c0_i32_1 = arith.constant 0 : i32
    return %arg1, %c0_i32, %c0_i32_0 : i32, i32, i32
  }
  func.func @transform_6(%arg0: i32, %arg1: i32) -> (i32, i32, i32) {
    %c0_i32 = arith.constant 0 : i32
    %c0_i32_0 = arith.constant 0 : i32
    %c0_i32_1 = arith.constant 0 : i32
    return %arg1, %c0_i32, %c0_i32_0 : i32, i32, i32
  }
  func.func @transform_7(%arg0: i32, %arg1: i32) -> (i32, i32, i32) {
    %c0_i32 = arith.constant 0 : i32
    %c0_i32_0 = arith.constant 0 : i32
    %c0_i32_1 = arith.constant 0 : i32
    return %arg1, %c0_i32, %c0_i32_0 : i32, i32, i32
  }
  func.func @transform_8(%arg0: i32, %arg1: i32) -> (i32, i32, i32) {
    %c0_i32 = arith.constant 0 : i32
    %c0_i32_0 = arith.constant 0 : i32
    %c0_i32_1 = arith.constant 0 : i32
    return %arg1, %c0_i32, %c0_i32_0 : i32, i32, i32
  }
  func.func @transform_9(%arg0: i32, %arg1: i32) -> (i32, i32, i32) {
    %c0_i32 = arith.constant 0 : i32
    %c0_i32_0 = arith.constant 0 : i32
    %c0_i32_1 = arith.constant 0 : i32
    return %arg1, %c0_i32, %c0_i32_0 : i32, i32, i32
  }
  func.func @transform_10(%arg0: i32, %arg1: i32) -> (i32, i32, i32) {
    %c0_i32 = arith.constant 0 : i32
    %c0_i32_0 = arith.constant 0 : i32
    %c0_i32_1 = arith.constant 0 : i32
    return %arg1, %c0_i32, %c0_i32_0 : i32, i32, i32
  }
  func.func @transform_11(%arg0: i32, %arg1: i32) -> (i32, i32, i32) {
    %c0_i32 = arith.constant 0 : i32
    %c0_i32_0 = arith.constant 0 : i32
    %c0_i32_1 = arith.constant 0 : i32
    return %arg1, %c0_i32, %c0_i32_0 : i32, i32, i32
  }
  func.func @transform_12(%arg0: i32, %arg1: i32) -> (i32, i32, i32) {
    %c0_i32 = arith.constant 0 : i32
    %c0_i32_0 = arith.constant 0 : i32
    %c0_i32_1 = arith.constant 0 : i32
    return %arg1, %c0_i32, %c0_i32_0 : i32, i32, i32
  }
  func.func @transform_13(%arg0: i32, %arg1: i32) -> (i32, i32) {
    %c0_i32 = arith.constant 0 : i32
    %c0_i32_0 = arith.constant 0 : i32
    %c0_i32_1 = arith.constant 0 : i32
    return %c0_i32, %c0_i32_0 : i32, i32
  }
  func.func @transform_14(%arg0: i32, %arg1: i32) -> (i32, i32) {
    %c0_i32 = arith.constant 0 : i32
    %c0_i32_0 = arith.constant 0 : i32
    %c0_i32_1 = arith.constant 0 : i32
    return %c0_i32, %c0_i32_0 : i32, i32
  }
  func.func @transform_15(%arg0: i32, %arg1: i32) -> (i32, i32, i32) {
    %c0_i32 = arith.constant 0 : i32
    %c0_i32_0 = arith.constant 0 : i32
    %c0_i32_1 = arith.constant 0 : i32
    return %arg0, %c0_i32, %c0_i32_0 : i32, i32, i32
  }
}

</mosaic_0001>

<llo_original>
// kernel: tpu_custom_call.1
$region0: #{tpu_custom_call.1}
  #allocation0 [shape = 'u32[]', space=smem, size = 0x4, offset = 0x4, fixed_abs, tag = 'smem constant byte address 0x4 - core index']
  #allocation1 [shape = 'u32[144,128]{1,0:T(1,128)}', space=vmem, size = 0x12000, scoped, tag = 'internal scratch']
  #allocation2 [shape = 'f32[8,8]{1,0:T(8,128)}', space=vmem, size = 0x1000, scoped, tag = 'scratch operand']
  %s0 = inlined_call_operand.vmem [shape: f32[2,8,32], index: 0, kind: input, shape index: {}]
  %s1 = inlined_call_operand.vmem [shape: f32[2,1,32], index: 1, kind: input, shape index: {}]
  %s2 = inlined_call_operand.vmem [shape: f32[2,1,32], index: 2, kind: input, shape index: {}]
  %s3 = inlined_call_operand.vmem [shape: bf16[2,32,96], index: 3, kind: input, shape index: {}]
  %s4 = inlined_call_operand.vmem [shape: f32[2,1,96], index: 4, kind: input, shape index: {}]
  %s5 = inlined_call_operand.vmem [shape: bf16[2,32,32], index: 5, kind: input, shape index: {}]
  %s6 = inlined_call_operand.vmem [shape: f32[2,1,32], index: 6, kind: input, shape index: {}]
  %s7 = inlined_call_operand.vmem [shape: f32[2,1,32], index: 7, kind: input, shape index: {}]
  %s8 = inlined_call_operand.vmem [shape: f32[2,1,32], index: 8, kind: input, shape index: {}]
  %s9 = inlined_call_operand.vmem [shape: bf16[2,32,128], index: 9, kind: input, shape index: {}]
  %s10 = inlined_call_operand.vmem [shape: f32[2,1,128], index: 10, kind: input, shape index: {}]
  %s11 = inlined_call_operand.vmem [shape: bf16[2,128,32], index: 11, kind: input, shape index: {}]
  %s12 = inlined_call_operand.vmem [shape: f32[2,1,32], index: 12, kind: input, shape index: {}]
  %s13 = inlined_call_operand.vmem [shape: f32[1,32], index: 13, kind: input, shape index: {}]
  %s14 = inlined_call_operand.vmem [shape: f32[1,32], index: 14, kind: input, shape index: {}]
  %s15 = inlined_call_operand.hbm [shape: f32[2,8,32], index: 15, kind: output, shape index: {}]
  %s16 = sld [smem:[#allocation0]]
  $region105: #{tpu_custom_call.1} parent=0
    _
  %s18 = ssub.s32 1, %s16
  %s19 = scalar_select 0, %s18, %s16
  $region1: #{tpu_custom_call.1} parent=0
    #allocation3 [shape = 'u8[8192]{0}', space=vmem, size = 0x2000, scoped, tag = 'output window, operand 0']
    #allocation4 [shape = 's32[2]{0}', space=sflag, size = 0x8, scoped, tag = 'scoped memory for tpu_custom_call.1']
    %20 = vsyncpa [#allocation4], 0
    %s21 = scalar_lea.sflag [#allocation4], 1
    %22 = vsyncpa %s21, 0
    loop: start=0, step=1, limit=6
    $region2: #{tpu_custom_call.1} parent=1 // loop_pre_header
      _
    $region3: #{tpu_custom_call.1} parent=1 // loop_header
      %s24 = sphi 0, %s28
      %p25 = scmp.ge.s32.totalorder %s24, 6
      %s31 = sphi 0, %s43
      %s32 = sphi 0, %s39
      %s33 = sphi 0, %s31
      %s34 = sphi 0, %s32
      %s35 = sphi 0, %s33
      %s36 = sphi 0, %s34
      %s46 = sphi 0, %s48
      %s49 = sphi 0, %s46
      %s50 = sphi 0, %s49
      %s66 = sphi 0, %s50
      %s72 = sphi 0, %s74
      %s75 = sphi 0, %s72
      %s76 = sphi 0, %s75
      %s92 = sphi 0, %s76
      %s98 = sphi 0, %s100
      %s101 = sphi 0, %s98
      %s102 = sphi 0, %s101
      %s118 = sphi 0, %s102
      %s124 = sphi 0, %s126
      %s127 = sphi 0, %s124
      %s128 = sphi 0, %s127
      %s144 = sphi 0, %s128
      %s150 = sphi 0, %s152
      %s153 = sphi 0, %s150
      %s154 = sphi 0, %s153
      %s170 = sphi 0, %s154
      %s176 = sphi 0, %s178
      %s179 = sphi 0, %s176
      %s180 = sphi 0, %s179
      %s196 = sphi 0, %s180
      %s202 = sphi 0, %s204
      %s205 = sphi 0, %s202
      %s206 = sphi 0, %s205
      %s222 = sphi 0, %s206
      %s228 = sphi 0, %s230
      %s231 = sphi 0, %s228
      %s232 = sphi 0, %s231
      %s248 = sphi 0, %s232
      %s254 = sphi 0, %s256
      %s257 = sphi 0, %s254
      %s258 = sphi 0, %s257
      %s274 = sphi 0, %s258
      %s280 = sphi 0, %s282
      %s283 = sphi 0, %s280
      %s284 = sphi 0, %s283
      %s300 = sphi 0, %s284
      %s306 = sphi 0, %s308
      %s309 = sphi 0, %s306
      %s310 = sphi 0, %s309
      %s326 = sphi 0, %s310
      %s332 = sphi 0, %s334
      %s335 = sphi 0, %s332
      %s336 = sphi 0, %s335
      %s352 = sphi 0, %s336
      %s358 = sphi 0, %s360
      %s361 = sphi 0, %s358
      %s362 = sphi 0, %s361
      %s378 = sphi 0, %s362
      %s382 = sphi 0, %s382
      %s384 = sphi 0, %s382
      %s385 = sphi 0, %s384
      %s399 = sphi 0, %s385
      %s403 = sphi 0, %s403
      %s405 = sphi 0, %s403
      %s406 = sphi 0, %s405
      %s420 = sphi 0, %s406
      %s426 = sphi 0, %s428
      %s429 = sphi 0, %s426
      %s430 = sphi 0, %s429
      %s446 = sphi 0, %s430
    $region4: #{tpu_custom_call.1} parent=1 // loop_header_branch
      %27 = sbr.rel (%p25) target = $region8
    $region5: #{tpu_custom_call.1} parent=1 // loop_body
      %s29 = ssub.s32 %s24, 1
      %s30 = ssub.s32 %s24, 2
      %s37 = sadd.s32 1, %s32
      %p38 = scmp.ge.s32.totalorder %s37, 2
      %s39 = scalar_select %p38, 0, %s37
      %s40 = sadd.s32 1, %s31
      %s41 = scalar_select %p38, %s40, %s31
      %p42 = scmp.ge.s32.totalorder %s41, 2
      %s43 = scalar_select %p42, 0, %s41
      %s44 = ssub.s32 %s31, %s43
      %p45 = scmp.eq.s32.totalorder %s44, 0
      %s47 = sadd.s32 %s46, 1
      %s48 = scalar_select %p45, %s46, %s47
      %p51 = pneg %p45
      %p52 = scmp.eq.s32.totalorder %s24, 3
      %p53 = por %p51, %p52
      %p54 = scmp.ne.s32.totalorder %s46, %s49
      %p55 = scmp.eq.s32.totalorder %s24, 0
      %p56 = por %p54, %p55
      %p57 = scmp.ne.s32.totalorder %s46, %s49
      %p58 = scmp.eq.s32.totalorder %s29, 3
      %p59 = por %p57, %p58
      %p60 = scmp.ne.s32.totalorder %s49, %s50
      %p61 = scmp.eq.s32.totalorder %s29, 0
      %p62 = por %p60, %p61
      %p63 = scmp.ne.s32.totalorder %s49, %s50
      %p64 = scmp.eq.s32.totalorder %s30, 3
      %p65 = por %p63, %p64
      %p67 = scmp.ne.s32.totalorder %s50, %s66
      %p68 = scmp.eq.s32.totalorder %s30, 0
      %p69 = por %p67, %p68
      %s70 = ssub.s32 %s32, %s39
      %p71 = scmp.eq.s32.totalorder %s70, 0
      %s73 = sadd.s32 %s72, 1
      %s74 = scalar_select %p71, %s72, %s73
      %p77 = pneg %p71
      %p78 = scmp.eq.s32.totalorder %s24, 3
      %p79 = por %p77, %p78
      %p80 = scmp.ne.s32.totalorder %s72, %s75
      %p81 = scmp.eq.s32.totalorder %s24, 0
      %p82 = por %p80, %p81
      %p83 = scmp.ne.s32.totalorder %s72, %s75
      %p84 = scmp.eq.s32.totalorder %s29, 3
      %p85 = por %p83, %p84
      %p86 = scmp.ne.s32.totalorder %s75, %s76
      %p87 = scmp.eq.s32.totalorder %s29, 0
      %p88 = por %p86, %p87
      %p89 = scmp.ne.s32.totalorder %s75, %s76
      %p90 = scmp.eq.s32.totalorder %s30, 3
      %p91 = por %p89, %p90
      %p93 = scmp.ne.s32.totalorder %s76, %s92
      %p94 = scmp.eq.s32.totalorder %s30, 0
      %p95 = por %p93, %p94
      %s96 = ssub.s32 %s32, %s39
      %p97 = scmp.eq.s32.totalorder %s96, 0
      %s99 = sadd.s32 %s98, 1
      %s100 = scalar_select %p97, %s98, %s99
      %p103 = pneg %p97
      %p104 = scmp.eq.s32.totalorder %s24, 3
      %p105 = por %p103, %p104
      %p106 = scmp.ne.s32.totalorder %s98, %s101
      %p107 = scmp.eq.s32.totalorder %s24, 0
      %p108 = por %p106, %p107
      %p109 = scmp.ne.s32.totalorder %s98, %s101
      %p110 = scmp.eq.s32.totalorder %s29, 3
      %p111 = por %p109, %p110
      %p112 = scmp.ne.s32.totalorder %s101, %s102
      %p113 = scmp.eq.s32.totalorder %s29, 0
      %p114 = por %p112, %p113
      %p115 = scmp.ne.s32.totalorder %s101, %s102
      %p116 = scmp.eq.s32.totalorder %s30, 3
      %p117 = por %p115, %p116
      %p119 = scmp.ne.s32.totalorder %s102, %s118
      %p120 = scmp.eq.s32.totalorder %s30, 0
      %p121 = por %p119, %p120
      %s122 = ssub.s32 %s32, %s39
      %p123 = scmp.eq.s32.totalorder %s122, 0
      %s125 = sadd.s32 %s124, 1
      %s126 = scalar_select %p123, %s124, %s125
      %p129 = pneg %p123
      %p130 = scmp.eq.s32.totalorder %s24, 3
      %p131 = por %p129, %p130
      %p132 = scmp.ne.s32.totalorder %s124, %s127
      %p133 = scmp.eq.s32.totalorder %s24, 0
      %p134 = por %p132, %p133
      %p135 = scmp.ne.s32.totalorder %s124, %s127
      %p136 = scmp.eq.s32.totalorder %s29, 3
      %p137 = por %p135, %p136
      %p138 = scmp.ne.s32.totalorder %s127, %s128
      %p139 = scmp.eq.s32.totalorder %s29, 0
      %p140 = por %p138, %p139
      %p141 = scmp.ne.s32.totalorder %s127, %s128
      %p142 = scmp.eq.s32.totalorder %s30, 3
      %p143 = por %p141, %p142
      %p145 = scmp.ne.s32.totalorder %s128, %s144
      %p146 = scmp.eq.s32.totalorder %s30, 0
      %p147 = por %p145, %p146
      %s148 = ssub.s32 %s32, %s39
      %p149 = scmp.eq.s32.totalorder %s148, 0
      %s151 = sadd.s32 %s150, 1
      %s152 = scalar_select %p149, %s150, %s151
      %p155 = pneg %p149
      %p156 = scmp.eq.s32.totalorder %s24, 3
      %p157 = por %p155, %p156
      %p158 = scmp.ne.s32.totalorder %s150, %s153
      %p159 = scmp.eq.s32.totalorder %s24, 0
      %p160 = por %p158, %p159
      %p161 = scmp.ne.s32.totalorder %s150, %s153
      %p162 = scmp.eq.s32.totalorder %s29, 3
      %p163 = por %p161, %p162
      %p164 = scmp.ne.s32.totalorder %s153, %s154
      %p165 = scmp.eq.s32.totalorder %s29, 0
      %p166 = por %p164, %p165
      %p167 = scmp.ne.s32.totalorder %s153, %s154
      %p168 = scmp.eq.s32.totalorder %s30, 3
      %p169 = por %p167, %p168
      %p171 = scmp.ne.s32.totalorder %s154, %s170
      %p172 = scmp.eq.s32.totalorder %s30, 0
      %p173 = por %p171, %p172
      %s174 = ssub.s32 %s32, %s39
      %p175 = scmp.eq.s32.totalorder %s174, 0
      %s177 = sadd.s32 %s176, 1
      %s178 = scalar_select %p175, %s176, %s177
      %p181 = pneg %p175
      %p182 = scmp.eq.s32.totalorder %s24, 3
      %p183 = por %p181, %p182
      %p184 = scmp.ne.s32.totalorder %s176, %s179
      %p185 = scmp.eq.s32.totalorder %s24, 0
      %p186 = por %p184, %p185
      %p187 = scmp.ne.s32.totalorder %s176, %s179
      %p188 = scmp.eq.s32.totalorder %s29, 3
      %p189 = por %p187, %p188
      %p190 = scmp.ne.s32.totalorder %s179, %s180
      %p191 = scmp.eq.s32.totalorder %s29, 0
      %p192 = por %p190, %p191
      %p193 = scmp.ne.s32.totalorder %s179, %s180
      %p194 = scmp.eq.s32.totalorder %s30, 3
      %p195 = por %p193, %p194
      %p197 = scmp.ne.s32.totalorder %s180, %s196
      %p198 = scmp.eq.s32.totalorder %s30, 0
      %p199 = por %p197, %p198
      %s200 = ssub.s32 %s32, %s39
      %p201 = scmp.eq.s32.totalorder %s200, 0
      %s203 = sadd.s32 %s202, 1
      %s204 = scalar_select %p201, %s202, %s203
      %p207 = pneg %p201
      %p208 = scmp.eq.s32.totalorder %s24, 3
      %p209 = por %p207, %p208
      %p210 = scmp.ne.s32.totalorder %s202, %s205
      %p211 = scmp.eq.s32.totalorder %s24, 0
      %p212 = por %p210, %p211
      %p213 = scmp.ne.s32.totalorder %s202, %s205
      %p214 = scmp.eq.s32.totalorder %s29, 3
      %p215 = por %p213, %p214
      %p216 = scmp.ne.s32.totalorder %s205, %s206
      %p217 = scmp.eq.s32.totalorder %s29, 0
      %p218 = por %p216, %p217
      %p219 = scmp.ne.s32.totalorder %s205, %s206
      %p220 = scmp.eq.s32.totalorder %s30, 3
      %p221 = por %p219, %p220
      %p223 = scmp.ne.s32.totalorder %s206, %s222
      %p224 = scmp.eq.s32.totalorder %s30, 0
      %p225 = por %p223, %p224
      %s226 = ssub.s32 %s32, %s39
      %p227 = scmp.eq.s32.totalorder %s226, 0
      %s229 = sadd.s32 %s228, 1
      %s230 = scalar_select %p227, %s228, %s229
      %p233 = pneg %p227
      %p234 = scmp.eq.s32.totalorder %s24, 3
      %p235 = por %p233, %p234
      %p236 = scmp.ne.s32.totalorder %s228, %s231
      %p237 = scmp.eq.s32.totalorder %s24, 0
      %p238 = por %p236, %p237
      %p239 = scmp.ne.s32.totalorder %s228, %s231
      %p240 = scmp.eq.s32.totalorder %s29, 3
      %p241 = por %p239, %p240
      %p242 = scmp.ne.s32.totalorder %s231, %s232
      %p243 = scmp.eq.s32.totalorder %s29, 0
      %p244 = por %p242, %p243
      %p245 = scmp.ne.s32.totalorder %s231, %s232
      %p246 = scmp.eq.s32.totalorder %s30, 3
      %p247 = por %p245, %p246
      %p249 = scmp.ne.s32.totalorder %s232, %s248
      %p250 = scmp.eq.s32.totalorder %s30, 0
      %p251 = por %p249, %p250
      %s252 = ssub.s32 %s32, %s39
      %p253 = scmp.eq.s32.totalorder %s252, 0
      %s255 = sadd.s32 %s254, 1
      %s256 = scalar_select %p253, %s254, %s255
      %p259 = pneg %p253
      %p260 = scmp.eq.s32.totalorder %s24, 3
      %p261 = por %p259, %p260
      %p262 = scmp.ne.s32.totalorder %s254, %s257
      %p263 = scmp.eq.s32.totalorder %s24, 0
      %p264 = por %p262, %p263
      %p265 = scmp.ne.s32.totalorder %s254, %s257
      %p266 = scmp.eq.s32.totalorder %s29, 3
      %p267 = por %p265, %p266
      %p268 = scmp.ne.s32.totalorder %s257, %s258
      %p269 = scmp.eq.s32.totalorder %s29, 0
      %p270 = por %p268, %p269
      %p271 = scmp.ne.s32.totalorder %s257, %s258
      %p272 = scmp.eq.s32.totalorder %s30, 3
      %p273 = por %p271, %p272
      %p275 = scmp.ne.s32.totalorder %s258, %s274
      %p276 = scmp.eq.s32.totalorder %s30, 0
      %p277 = por %p275, %p276
      %s278 = ssub.s32 %s32, %s39
      %p279 = scmp.eq.s32.totalorder %s278, 0
      %s281 = sadd.s32 %s280, 1
      %s282 = scalar_select %p279, %s280, %s281
      %p285 = pneg %p279
      %p286 = scmp.eq.s32.totalorder %s24, 3
      %p287 = por %p285, %p286
      %p288 = scmp.ne.s32.totalorder %s280, %s283
      %p289 = scmp.eq.s32.totalorder %s24, 0
      %p290 = por %p288, %p289
      %p291 = scmp.ne.s32.totalorder %s280, %s283
      %p292 = scmp.eq.s32.totalorder %s29, 3
      %p293 = por %p291, %p292
      %p294 = scmp.ne.s32.totalorder %s283, %s284
      %p295 = scmp.eq.s32.totalorder %s29, 0
      %p296 = por %p294, %p295
      %p297 = scmp.ne.s32.totalorder %s283, %s284
      %p298 = scmp.eq.s32.totalorder %s30, 3
      %p299 = por %p297, %p298
      %p301 = scmp.ne.s32.totalorder %s284, %s300
      %p302 = scmp.eq.s32.totalorder %s30, 0
      %p303 = por %p301, %p302
      %s304 = ssub.s32 %s32, %s39
      %p305 = scmp.eq.s32.totalorder %s304, 0
      %s307 = sadd.s32 %s306, 1
      %s308 = scalar_select %p305, %s306, %s307
      %p311 = pneg %p305
      %p312 = scmp.eq.s32.totalorder %s24, 3
      %p313 = por %p311, %p312
      %p314 = scmp.ne.s32.totalorder %s306, %s309
      %p315 = scmp.eq.s32.totalorder %s24, 0
      %p316 = por %p314, %p315
      %p317 = scmp.ne.s32.totalorder %s306, %s309
      %p318 = scmp.eq.s32.totalorder %s29, 3
      %p319 = por %p317, %p318
      %p320 = scmp.ne.s32.totalorder %s309, %s310
      %p321 = scmp.eq.s32.totalorder %s29, 0
      %p322 = por %p320, %p321
      %p323 = scmp.ne.s32.totalorder %s309, %s310
      %p324 = scmp.eq.s32.totalorder %s30, 3
      %p325 = por %p323, %p324
      %p327 = scmp.ne.s32.totalorder %s310, %s326
      %p328 = scmp.eq.s32.totalorder %s30, 0
      %p329 = por %p327, %p328
      %s330 = ssub.s32 %s32, %s39
      %p331 = scmp.eq.s32.totalorder %s330, 0
      %s333 = sadd.s32 %s332, 1
      %s334 = scalar_select %p331, %s332, %s333
      %p337 = pneg %p331
      %p338 = scmp.eq.s32.totalorder %s24, 3
      %p339 = por %p337, %p338
      %p340 = scmp.ne.s32.totalorder %s332, %s335
      %p341 = scmp.eq.s32.totalorder %s24, 0
      %p342 = por %p340, %p341
      %p343 = scmp.ne.s32.totalorder %s332, %s335
      %p344 = scmp.eq.s32.totalorder %s29, 3
      %p345 = por %p343, %p344
      %p346 = scmp.ne.s32.totalorder %s335, %s336
      %p347 = scmp.eq.s32.totalorder %s29, 0
      %p348 = por %p346, %p347
      %p349 = scmp.ne.s32.totalorder %s335, %s336
      %p350 = scmp.eq.s32.totalorder %s30, 3
      %p351 = por %p349, %p350
      %p353 = scmp.ne.s32.totalorder %s336, %s352
      %p354 = scmp.eq.s32.totalorder %s30, 0
      %p355 = por %p353, %p354
      %s356 = ssub.s32 %s32, %s39
      %p357 = scmp.eq.s32.totalorder %s356, 0
      %s359 = sadd.s32 %s358, 1
      %s360 = scalar_select %p357, %s358, %s359
      %p363 = pneg %p357
      %p364 = scmp.eq.s32.totalorder %s24, 3
      %p365 = por %p363, %p364
      %p366 = scmp.ne.s32.totalorder %s358, %s361
      %p367 = scmp.eq.s32.totalorder %s24, 0
      %p368 = por %p366, %p367
      %p369 = scmp.ne.s32.totalorder %s358, %s361
      %p370 = scmp.eq.s32.totalorder %s29, 3
      %p371 = por %p369, %p370
      %p372 = scmp.ne.s32.totalorder %s361, %s362
      %p373 = scmp.eq.s32.totalorder %s29, 0
      %p374 = por %p372, %p373
      %p375 = scmp.ne.s32.totalorder %s361, %s362
      %p376 = scmp.eq.s32.totalorder %s30, 3
      %p377 = por %p375, %p376
      %p379 = scmp.ne.s32.totalorder %s362, %s378
      %p380 = scmp.eq.s32.totalorder %s30, 0
      %p381 = por %p379, %p380
      %s383 = sadd.s32 %s382, 1
      %p386 = scmp.eq.s32.totalorder %s24, 3
      %p387 = scmp.ne.s32.totalorder %s382, %s384
      %p388 = scmp.eq.s32.totalorder %s24, 0
      %p389 = por %p387, %p388
      %p390 = scmp.ne.s32.totalorder %s382, %s384
      %p391 = scmp.eq.s32.totalorder %s29, 3
      %p392 = por %p390, %p391
      %p393 = scmp.ne.s32.totalorder %s384, %s385
      %p394 = scmp.eq.s32.totalorder %s29, 0
      %p395 = por %p393, %p394
      %p396 = scmp.ne.s32.totalorder %s384, %s385
      %p397 = scmp.eq.s32.totalorder %s30, 3
      %p398 = por %p396, %p397
      %p400 = scmp.ne.s32.totalorder %s385, %s399
      %p401 = scmp.eq.s32.totalorder %s30, 0
      %p402 = por %p400, %p401
      %s404 = sadd.s32 %s403, 1
      %p407 = scmp.eq.s32.totalorder %s24, 3
      %p408 = scmp.ne.s32.totalorder %s403, %s405
      %p409 = scmp.eq.s32.totalorder %s24, 0
      %p410 = por %p408, %p409
      %p411 = scmp.ne.s32.totalorder %s403, %s405
      %p412 = scmp.eq.s32.totalorder %s29, 3
      %p413 = por %p411, %p412
      %p414 = scmp.ne.s32.totalorder %s405, %s406
      %p415 = scmp.eq.s32.totalorder %s29, 0
      %p416 = por %p414, %p415
      %p417 = scmp.ne.s32.totalorder %s405, %s406
      %p418 = scmp.eq.s32.totalorder %s30, 3
      %p419 = por %p417, %p418
      %p421 = scmp.ne.s32.totalorder %s406, %s420
      %p422 = scmp.eq.s32.totalorder %s30, 0
      %p423 = por %p421, %p422
      %s424 = ssub.s32 %s31, %s43
      %p425 = scmp.eq.s32.totalorder %s424, 0
      %s427 = sadd.s32 %s426, 1
      %s428 = scalar_select %p425, %s426, %s427
      %p431 = pneg %p425
      %p432 = scmp.eq.s32.totalorder %s24, 3
      %p433 = por %p431, %p432
      %p434 = scmp.ne.s32.totalorder %s426, %s429
      %p435 = scmp.eq.s32.totalorder %s24, 0
      %p436 = por %p434, %p435
      %p437 = scmp.ne.s32.totalorder %s426, %s429
      %p438 = scmp.eq.s32.totalorder %s29, 3
      %p439 = por %p437, %p438
      %p440 = scmp.ne.s32.totalorder %s429, %s430
      %p441 = scmp.eq.s32.totalorder %s29, 0
      %p442 = por %p440, %p441
      %p443 = scmp.ne.s32.totalorder %s429, %s430
      %p444 = scmp.eq.s32.totalorder %s30, 3
      %p445 = por %p443, %p444
      %p447 = scmp.ne.s32.totalorder %s430, %s446
      %p448 = scmp.eq.s32.totalorder %s30, 0
      %p449 = por %p447, %p448
      %p450 = scmp.le.s32.totalorder 1, %s24
      %p451 = scmp.lt.s32.totalorder %s24, 5
      %p452 = pnand %p450, %p451
      %p453 = pneg %p452
      // Predicated region
      $region9: #{tpu_custom_call.1} parent=5 // pred_check
        _
      $region10: #{tpu_custom_call.1} parent=5 // pred_check_branch
        %455 = sbr.rel (%p452) target = $region12
      $region11: #{tpu_custom_call.1} parent=5 // pred_region
        %s456 = ssub.s32 %s24, 1
        // Predicated region
        $region13: #{tpu_custom_call.1} parent=11 // pred_check
          %p457 = pneg %p395
        $region14: #{tpu_custom_call.1} parent=11 // pred_check_branch
          %459 = sbr.rel (%p457) target = $region16
        $region15: #{tpu_custom_call.1} parent=11 // pred_region
          _
        $region16: #{tpu_custom_call.1} parent=11 // pred_fallthru
          _
        // Predicated region
        $region17: #{tpu_custom_call.1} parent=11 // pred_check
          %p460 = pneg %p416
        $region18: #{tpu_custom_call.1} parent=11 // pred_check_branch
          %462 = sbr.rel (%p460) target = $region20
        $region19: #{tpu_custom_call.1} parent=11 // pred_region
          _
        $region20: #{tpu_custom_call.1} parent=11 // pred_fallthru
          _
      $region12: #{tpu_custom_call.1} parent=5 // pred_fallthru
        _
      %p463 = scmp.lt.s32.totalorder %s24, 4
      // Predicated region
      $region21: #{tpu_custom_call.1} parent=5 // pred_check
        %p464 = pneg %p463
      $region22: #{tpu_custom_call.1} parent=5 // pred_check_branch
        %466 = sbr.rel (%p464) target = $region24
      $region23: #{tpu_custom_call.1} parent=5 // pred_region
        // Predicated region
        $region25: #{tpu_custom_call.1} parent=23 // pred_check
          %p467 = pneg %p56
        $region26: #{tpu_custom_call.1} parent=23 // pred_check_branch
          %469 = sbr.rel (%p467) target = $region28
        $region27: #{tpu_custom_call.1} parent=23 // pred_region
          %p470 = scmp.lt.s32.totalorder %s31, 1
          %s471 = scalar_select %p470, %s31, 1
          %s472 = smul.addr %s471, 8
          %s473 = scalar_lea.vmem %s0, %s472
        $region28: #{tpu_custom_call.1} parent=23 // pred_fallthru
          _
        // Predicated region
        $region29: #{tpu_custom_call.1} parent=23 // pred_check
          %p474 = pneg %p82
        $region30: #{tpu_custom_call.1} parent=23 // pred_check_branch
          %476 = sbr.rel (%p474) target = $region32
        $region31: #{tpu_custom_call.1} parent=23 // pred_region
          %p477 = scmp.lt.s32.totalorder %s32, 1
          %s478 = scalar_select %p477, %s32, 1
          %s479 = scalar_lea.vmem %s1, %s478
        $region32: #{tpu_custom_call.1} parent=23 // pred_fallthru
          _
        // Predicated region
        $region33: #{tpu_custom_call.1} parent=23 // pred_check
          %p480 = pneg %p108
        $region34: #{tpu_custom_call.1} parent=23 // pred_check_branch
          %482 = sbr.rel (%p480) target = $region36
        $region35: #{tpu_custom_call.1} parent=23 // pred_region
          %p483 = scmp.lt.s32.totalorder %s32, 1
          %s484 = scalar_select %p483, %s32, 1
          %s485 = scalar_lea.vmem %s2, %s484
        $region36: #{tpu_custom_call.1} parent=23 // pred_fallthru
          _
        // Predicated region
        $region37: #{tpu_custom_call.1} parent=23 // pred_check
          %p486 = pneg %p134
        $region38: #{tpu_custom_call.1} parent=23 // pred_check_branch
          %488 = sbr.rel (%p486) target = $region40
        $region39: #{tpu_custom_call.1} parent=23 // pred_region
          %p489 = scmp.lt.s32.totalorder %s32, 1
          %s490 = scalar_select %p489, %s32, 1
          %s491 = smul.addr %s490, 4
          %s492 = smul.addr %s491, 4
          %s493 = scalar_lea.vmem %s3, %s492
        $region40: #{tpu_custom_call.1} parent=23 // pred_fallthru
          _
        // Predicated region
        $region41: #{tpu_custom_call.1} parent=23 // pred_check
          %p494 = pneg %p160
        $region42: #{tpu_custom_call.1} parent=23 // pred_check_branch
          %496 = sbr.rel (%p494) target = $region44
        $region43: #{tpu_custom_call.1} parent=23 // pred_region
          %p497 = scmp.lt.s32.totalorder %s32, 1
          %s498 = scalar_select %p497, %s32, 1
          %s499 = scalar_lea.vmem %s4, %s498
        $region44: #{tpu_custom_call.1} parent=23 // pred_fallthru
          _
        // Predicated region
        $region45: #{tpu_custom_call.1} parent=23 // pred_check
          %p500 = pneg %p186
        $region46: #{tpu_custom_call.1} parent=23 // pred_check_branch
          %502 = sbr.rel (%p500) target = $region48
        $region47: #{tpu_custom_call.1} parent=23 // pred_region
          %p503 = scmp.lt.s32.totalorder %s32, 1
          %s504 = scalar_select %p503, %s32, 1
          %s505 = smul.addr %s504, 4
          %s506 = smul.addr %s505, 4
          %s507 = scalar_lea.vmem %s5, %s506
        $region48: #{tpu_custom_call.1} parent=23 // pred_fallthru
          _
        // Predicated region
        $region49: #{tpu_custom_call.1} parent=23 // pred_check
          %p508 = pneg %p212
        $region50: #{tpu_custom_call.1} parent=23 // pred_check_branch
          %510 = sbr.rel (%p508) target = $region52
        $region51: #{tpu_custom_call.1} parent=23 // pred_region
          %p511 = scmp.lt.s32.totalorder %s32, 1
          %s512 = scalar_select %p511, %s32, 1
          %s513 = scalar_lea.vmem %s6, %s512
        $region52: #{tpu_custom_call.1} parent=23 // pred_fallthru
          _
        // Predicated region
        $region53: #{tpu_custom_call.1} parent=23 // pred_check
          %p514 = pneg %p238
        $region54: #{tpu_custom_call.1} parent=23 // pred_check_branch
          %516 = sbr.rel (%p514) target = $region56
        $region55: #{tpu_custom_call.1} parent=23 // pred_region
          %p517 = scmp.lt.s32.totalorder %s32, 1
          %s518 = scalar_select %p517, %s32, 1
          %s519 = scalar_lea.vmem %s7, %s518
        $region56: #{tpu_custom_call.1} parent=23 // pred_fallthru
          _
        // Predicated region
        $region57: #{tpu_custom_call.1} parent=23 // pred_check
          %p520 = pneg %p264
        $region58: #{tpu_custom_call.1} parent=23 // pred_check_branch
          %522 = sbr.rel (%p520) target = $region60
        $region59: #{tpu_custom_call.1} parent=23 // pred_region
          %p523 = scmp.lt.s32.totalorder %s32, 1
          %s524 = scalar_select %p523, %s32, 1
          %s525 = scalar_lea.vmem %s8, %s524
        $region60: #{tpu_custom_call.1} parent=23 // pred_fallthru
          _
        // Predicated region
        $region61: #{tpu_custom_call.1} parent=23 // pred_check
          %p526 = pneg %p290
        $region62: #{tpu_custom_call.1} parent=23 // pred_check_branch
          %528 = sbr.rel (%p526) target = $region64
        $region63: #{tpu_custom_call.1} parent=23 // pred_region
          %p529 = scmp.lt.s32.totalorder %s32, 1
          %s530 = scalar_select %p529, %s32, 1
          %s531 = smul.addr %s530, 4
          %s532 = smul.addr %s531, 4
          %s533 = scalar_lea.vmem %s9, %s532
        $region64: #{tpu_custom_call.1} parent=23 // pred_fallthru
          _
        // Predicated region
        $region65: #{tpu_custom_call.1} parent=23 // pred_check
          %p534 = pneg %p316
        $region66: #{tpu_custom_call.1} parent=23 // pred_check_branch
          %536 = sbr.rel (%p534) target = $region68
        $region67: #{tpu_custom_call.1} parent=23 // pred_region
          %p537 = scmp.lt.s32.totalorder %s32, 1
          %s538 = scalar_select %p537, %s32, 1
          %s539 = scalar_lea.vmem %s10, %s538
        $region68: #{tpu_custom_call.1} parent=23 // pred_fallthru
          _
        // Predicated region
        $region69: #{tpu_custom_call.1} parent=23 // pred_check
          %p540 = pneg %p342
        $region70: #{tpu_custom_call.1} parent=23 // pred_check_branch
          %542 = sbr.rel (%p540) target = $region72
        $region71: #{tpu_custom_call.1} parent=23 // pred_region
          %p543 = scmp.lt.s32.totalorder %s32, 1
          %s544 = scalar_select %p543, %s32, 1
          %s545 = smul.addr %s544, 16
          %s546 = smul.addr %s545, 4
          %s547 = scalar_lea.vmem %s11, %s546
        $region72: #{tpu_custom_call.1} parent=23 // pred_fallthru
          _
        // Predicated region
        $region73: #{tpu_custom_call.1} parent=23 // pred_check
          %p548 = pneg %p368
        $region74: #{tpu_custom_call.1} parent=23 // pred_check_branch
          %550 = sbr.rel (%p548) target = $region76
        $region75: #{tpu_custom_call.1} parent=23 // pred_region
          %p551 = scmp.lt.s32.totalorder %s32, 1
          %s552 = scalar_select %p551, %s32, 1
          %s553 = scalar_lea.vmem %s12, %s552
        $region76: #{tpu_custom_call.1} parent=23 // pred_fallthru
          _
      $region24: #{tpu_custom_call.1} parent=5 // pred_fallthru
        _
      %p554 = scmp.le.s32.totalorder 1, %s24
      %p555 = scmp.lt.s32.totalorder %s24, 5
      %p556 = pnand %p554, %p555
      %p557 = pneg %p556
      // Predicated region
      $region77: #{tpu_custom_call.1} parent=5 // pred_check
        _
      $region78: #{tpu_custom_call.1} parent=5 // pred_check_branch
        %559 = sbr.rel (%p556) target = $region80
      $region79: #{tpu_custom_call.1} parent=5 // pred_region
        %s560 = ssub.s32 %s24, 1
        %p561 = scmp.lt.s32.totalorder %s33, 1
        %s562 = scalar_select %p561, %s33, 1
        %s563 = smul.addr %s562, 8
        %s564 = scalar_lea.vmem %s0, %s563
        %p565 = pneg %p62
        %p566 = pneg %p59
        %p567 = scmp.lt.s32.totalorder %s34, 1
        %s568 = scalar_select %p567, %s34, 1
        %s569 = scalar_lea.vmem %s1, %s568
        %p570 = pneg %p88
        %p571 = pneg %p85
        %p572 = scmp.lt.s32.totalorder %s34, 1
        %s573 = scalar_select %p572, %s34, 1
        %s574 = scalar_lea.vmem %s2, %s573
        %p575 = pneg %p114
        %p576 = pneg %p111
        %p577 = scmp.lt.s32.totalorder %s34, 1
        %s578 = scalar_select %p577, %s34, 1
        %s579 = smul.addr %s578, 4
        %s580 = smul.addr %s579, 4
        %s581 = scalar_lea.vmem %s3, %s580
        %p582 = pneg %p140
        %p583 = pneg %p137
        %p584 = scmp.lt.s32.totalorder %s34, 1
        %s585 = scalar_select %p584, %s34, 1
        %s586 = scalar_lea.vmem %s4, %s585
        %p587 = pneg %p166
        %p588 = pneg %p163
        %p589 = scmp.lt.s32.totalorder %s34, 1
        %s590 = scalar_select %p589, %s34, 1
        %s591 = smul.addr %s590, 4
        %s592 = smul.addr %s591, 4
        %s593 = scalar_lea.vmem %s5, %s592
        %p594 = pneg %p192
        %p595 = pneg %p189
        %p596 = scmp.lt.s32.totalorder %s34, 1
        %s597 = scalar_select %p596, %s34, 1
        %s598 = scalar_lea.vmem %s6, %s597
        %p599 = pneg %p218
        %p600 = pneg %p215
        %p601 = scmp.lt.s32.totalorder %s34, 1
        %s602 = scalar_select %p601, %s34, 1
        %s603 = scalar_lea.vmem %s7, %s602
        %p604 = pneg %p244
        %p605 = pneg %p241
        %p606 = scmp.lt.s32.totalorder %s34, 1
        %s607 = scalar_select %p606, %s34, 1
        %s608 = scalar_lea.vmem %s8, %s607
        %p609 = pneg %p270
        %p610 = pneg %p267
        %p611 = scmp.lt.s32.totalorder %s34, 1
        %s612 = scalar_select %p611, %s34, 1
        %s613 = smul.addr %s612, 4
        %s614 = smul.addr %s613, 4
        %s615 = scalar_lea.vmem %s9, %s614
        %p616 = pneg %p296
        %p617 = pneg %p293
        %p618 = scmp.lt.s32.totalorder %s34, 1
        %s619 = scalar_select %p618, %s34, 1
        %s620 = scalar_lea.vmem %s10, %s619
        %p621 = pneg %p322
        %p622 = pneg %p319
        %p623 = scmp.lt.s32.totalorder %s34, 1
        %s624 = scalar_select %p623, %s34, 1
        %s625 = smul.addr %s624, 16
        %s626 = smul.addr %s625, 4
        %s627 = scalar_lea.vmem %s11, %s626
        %p628 = pneg %p348
        %p629 = pneg %p345
        %p630 = scmp.lt.s32.totalorder %s34, 1
        %s631 = scalar_select %p630, %s34, 1
        %s632 = scalar_lea.vmem %s12, %s631
        %p633 = pneg %p374
        %p634 = pneg %p371
        %p635 = pneg %p395
        %p636 = pneg %p392
        %p637 = pneg %p416
        %p638 = pneg %p413
        %p639 = pneg %p442
        %p640 = pneg %p439
        %s641 = sand.u32 %s429, 1
        %s642 = scalar_lea.sflag [#allocation4], %s641
        %s643 = sand.u32 %s429, 1
        %s644 = smul.addr %s643, 8
        %s645 = scalar_lea.vmem [#allocation3], %s644
        %p646 = scmp.lt.s32.totalorder %s33, 1
        %s647 = scalar_select %p646, %s33, 1
        %s648 = smul.addr %s647, 8
        %s649 = scalar_lea.vmem %s0, %s648
        %p650 = scmp.lt.s32.totalorder %s34, 1
        %s651 = scalar_select %p650, %s34, 1
        %s652 = scalar_lea.vmem %s1, %s651
        %p653 = scmp.lt.s32.totalorder %s34, 1
        %s654 = scalar_select %p653, %s34, 1
        %s655 = scalar_lea.vmem %s2, %s654
        %p656 = scmp.lt.s32.totalorder %s34, 1
        %s657 = scalar_select %p656, %s34, 1
        %s658 = smul.addr %s657, 4
        %s659 = smul.addr %s658, 4
        %s660 = scalar_lea.vmem %s3, %s659
        %p661 = scmp.lt.s32.totalorder %s34, 1
        %s662 = scalar_select %p661, %s34, 1
        %s663 = scalar_lea.vmem %s4, %s662
        %p664 = scmp.lt.s32.totalorder %s34, 1
        %s665 = scalar_select %p664, %s34, 1
        %s666 = smul.addr %s665, 4
        %s667 = smul.addr %s666, 4
        %s668 = scalar_lea.vmem %s5, %s667
        %p669 = scmp.lt.s32.totalorder %s34, 1
        %s670 = scalar_select %p669, %s34, 1
        %s671 = scalar_lea.vmem %s6, %s670
        %p672 = scmp.lt.s32.totalorder %s34, 1
        %s673 = scalar_select %p672, %s34, 1
        %s674 = scalar_lea.vmem %s7, %s673
        %p675 = scmp.lt.s32.totalorder %s34, 1
        %s676 = scalar_select %p675, %s34, 1
        %s677 = scalar_lea.vmem %s8, %s676
        %p678 = scmp.lt.s32.totalorder %s34, 1
        %s679 = scalar_select %p678, %s34, 1
        %s680 = smul.addr %s679, 4
        %s681 = smul.addr %s680, 4
        %s682 = scalar_lea.vmem %s9, %s681
        %p683 = scmp.lt.s32.totalorder %s34, 1
        %s684 = scalar_select %p683, %s34, 1
        %s685 = scalar_lea.vmem %s10, %s684
        %p686 = scmp.lt.s32.totalorder %s34, 1
        %s687 = scalar_select %p686, %s34, 1
        %s688 = smul.addr %s687, 16
        %s689 = smul.addr %s688, 4
        %s690 = scalar_lea.vmem %s11, %s689
        %p691 = scmp.lt.s32.totalorder %s34, 1
        %s692 = scalar_select %p691, %s34, 1
        %s693 = scalar_lea.vmem %s12, %s692
        %p695 = scmp.eq.s32.totalorder %s34, 0
        // Predicated region
        $region81: #{tpu_custom_call.1} parent=79 // pred_check
          %p696 = pneg %p695
        $region82: #{tpu_custom_call.1} parent=79 // pred_check_branch
          %698 = sbr.rel (%p696) target = $region84
        $region83: #{tpu_custom_call.1} parent=79 // pred_region
          %v699 = vld [vmem:[%s649] sm:$0xff]
          %vm700 = vcmask 261120
          %701 = vst.msk [vmem:[%s645] sm:$0xff] %vm700, %v699
          %v702 = vlaneseq
          %v703 = vshrl.u32 %v702, 7
          %v704 = vlaneseq
          %v705 = vand.u32 %v704, 127
          %vm706 = vcmp.gt.s32.totalorder %v705, %v703
          %v707 = vsel %vm706, -1e+30, 0.0
          %vm708 = vcmask 64512
          %709 = vst.msk [vmem:[#allocation2] sm:$0xff] %vm708, %v707
        $region84: #{tpu_custom_call.1} parent=79 // pred_fallthru
          _
        %v710 = vld [vmem:[%s645] sm:$0xff]
        %v711 = vld [vmem:[%s652] sm:$0x1]
        %v712 = vld [vmem:[%s655] sm:$0x1]
        %vm713 = vcmask 261120
        %v714 = vsel %vm713, %v710, 0.0
        %715 = vadd.xlane.f32.xlu0 %v714
        %v716 = vpop.xlane.xlu0 %715
        %v717 = vrcp.pop 32.0
        %v718 = vmul.f32 %v716, %v717
        %v719 = vsub.f32 %v710, %v718
        %v720 = vmul.f32 %v719, %v719
        %v721 = vsel %vm713, %v720, 0.0
        %722 = vadd.xlane.f32.xlu0 %v721
        %v723 = vpop.xlane.xlu0 %722
        %v724 = vmul.f32 %v723, %v717
        %v725 = vadd.f32 %v724, 1e-05
        %v726 = vrsqrt.pop %v725
        %v727 = vmul.f32 %v719, %v726
        %v729 = vlaneseq
        %v730 = vshrl.u32 %v729, 7
        %v731 = vsub.s32 0, %v730
        %v732 = vrot.slane %v711, %v731
        %v734 = vmul.f32 %v727, %v732
        %v736 = vlaneseq
        %v737 = vshrl.u32 %v736, 7
        %v738 = vsub.s32 0, %v737
        %v739 = vrot.slane %v712, %v738
        %v741 = vadd.f32 %v734, %v739
        %v742 = vpack.c.bf16 %v741, %v741
        %v743 = vld [vmem:[%s660] sm:$0xf]
        %v744 = vld [vmem:[%s660 + $0x4] sm:$0xf]
        %v745 = vld [vmem:[%s660 + $0x8] sm:$0xf]
        %v746 = vld [vmem:[%s660 + $0xc] sm:$0xf]
        %v747 = vld [vmem:[%s663] sm:$0x1]
        %v749 = vlaneseq
        %v750 = vshrl.u32 %v749, 7
        %v751 = vsub.s32 0, %v750
        %v752 = vrot.slane %v747, %v751
        %v758 = vunpack.c.l.b16 %v743
        %v759 = vunpack.c.l.b16 %v744
        %v760 = vunpack.c.l.b16 %v745
        %v761 = vunpack.c.l.b16 %v746
        %v762 = vpack.c.b16 %v759, %v758
        %v763 = vpack.c.b16 %v761, %v760
        %v767 = vsel %vm713, %v742, 0
        %769 = vmatprep.subr.bf16.mxu0 0
        %770 = vmatpush1.bf16.msra.mxu0 0
        %771 = vmatprep.subr.bf16.mxu0 0
        %772 = vmatpush1.bf16.msra.mxu0 0
        %773 = vmatprep.subr.bf16.mxu0 0
        %774 = vmatpush1.bf16.msra.mxu0 0
        %775 = vmatprep.subr.bf16.mxu0 0
        %776 = vmatpush1.bf16.msra.mxu0 0
        %777 = vmatprep.subr.bf16.mxu0 0
        %778 = vmatpush1.bf16.msra.mxu0 0
        %779 = vmatprep.subr.bf16.mxu0 0
        %780 = vmatpush1.bf16.msra.mxu0 0
        %781 = vmatprep.subr.bf16.mxu0 0
        %782 = vmatpush1.bf16.msra.mxu0 %v763
        %783 = vmatprep.subr.bf16.mxu0 0
        %784 = vmatpush1.bf16.msra.mxu0 %v762
        %785 = vmatprep.subr.bf16.mxu0 0
        %786 = vmatpush2.bf16.msra.mxu0 0
        %787 = vmatprep.subr.bf16.mxu0 0
        %788 = vmatpush2.bf16.msra.mxu0 0
        %789 = vmatprep.subr.bf16.mxu0 0
        %790 = vmatpush2.bf16.msra.mxu0 0
        %791 = vmatprep.subr.bf16.mxu0 0
        %792 = vmatpush2.bf16.msra.mxu0 0
        %793 = vmatprep.subr.bf16.mxu0 0
        %794 = vmatpush2.bf16.msra.mxu0 0
        %795 = vmatprep.subr.bf16.mxu0 0
        %796 = vmatpush2.bf16.msra.mxu0 0
        %797 = vmatprep.subr.bf16.mxu0 0
        %798 = vmatpush2.bf16.msra.mxu0 0
        %799 = vmatprep.subr.bf16.mxu0 0
        %800 = vmatpush2.bf16.msra.mxu0 0
        %801 = vmatprep.mubr.bf16.mxu0 0
        %802 = vmatmul.mubr.bf16.gmra.mxu0 %v767
        %v803 = vpop.f32.mrf.mxu0
        %v804 = vadd.f32 %v752, %v803
        %v805 = vpop.f32.mrf.mxu0
        %v806 = vpop.f32.mrf.mxu0
        %v807 = vpop.f32.mrf.mxu0
        %808 = vdwg.mxu0
        %v809 = vld [vmem:[#allocation2] sm:$0xff]
        %v810 = vmul.f32 %v804, 0.35355338
        %v811 = vpack.c.bf16 %v810, %v810
        %v812 = vpack.c.bf16 %v804, %v804
        %814 = vrot.lane.b32.xlu0 %v812, 96
        %v815 = vpop.permute.xlu0 %814
        %vm816 = vcmask 64512
        %v818 = vsel %vm816, %v811, 0
        %v821 = vsel %vm816, %v815, 0
        %823 = vmatprep.subr.bf16.mxu0 0
        %824 = vmatpush1.bf16.xpose.msra.mxu0 0
        %825 = vmatprep.subr.bf16.mxu0 0
        %826 = vmatpush1.bf16.xpose.msra.mxu0 0
        %827 = vmatprep.subr.bf16.mxu0 0
        %828 = vmatpush1.bf16.xpose.msra.mxu0 0
        %829 = vmatprep.subr.bf16.mxu0 0
        %830 = vmatpush1.bf16.xpose.msra.mxu0 0
        %831 = vmatprep.subr.bf16.mxu0 0
        %832 = vmatpush1.bf16.xpose.msra.mxu0 0
        %833 = vmatprep.subr.bf16.mxu0 0
        %834 = vmatpush1.bf16.xpose.msra.mxu0 0
        %835 = vmatprep.subr.bf16.mxu0 0
        %836 = vmatpush1.bf16.xpose.msra.mxu0 0
        %837 = vmatprep.subr.bf16.mxu0 0
        %838 = vmatpush1.bf16.xpose.msra.mxu0 %v821
        %839 = vmatprep.subr.bf16.mxu0 0
        %840 = vmatpush2.bf16.xpose.msra.mxu0 0
        %841 = vmatprep.subr.bf16.mxu0 0
        %842 = vmatpush2.bf16.xpose.msra.mxu0 0
        %843 = vmatprep.subr.bf16.mxu0 0
        %844 = vmatpush2.bf16.xpose.msra.mxu0 0
        %845 = vmatprep.subr.bf16.mxu0 0
        %846 = vmatpush2.bf16.xpose.msra.mxu0 0
        %847 = vmatprep.subr.bf16.mxu0 0
        %848 = vmatpush2.bf16.xpose.msra.mxu0 0
        %849 = vmatprep.subr.bf16.mxu0 0
        %850 = vmatpush2.bf16.xpose.msra.mxu0 0
        %851 = vmatprep.subr.bf16.mxu0 0
        %852 = vmatpush2.bf16.xpose.msra.mxu0 0
        %853 = vmatprep.subr.bf16.mxu0 0
        %854 = vmatpush2.bf16.xpose.msra.mxu0 0
        %855 = vmatprep.mubr.bf16.mxu0 0
        %856 = vmatmul.mubr.bf16.gmra.mxu0 %v818
        %v857 = vpop.f32.mrf.mxu0
        %v858 = vadd.f32 %v809, %v857
        %v859 = vpop.f32.mrf.mxu0
        %v860 = vpop.f32.mrf.mxu0
        %v861 = vpop.f32.mrf.mxu0
        %862 = vdwg.mxu0
        %v863 = vsel %vm816, %v858, -inf
        %864 = vmax.xlane.f32.xlu0 %v863
        %v865 = vpop.xlane.xlu0 %864
        %v866 = vsub.f32 %v858, %v865
        %v867 = vmul.f32 %v866, 1.442695
        %v868 = vpow.pop %v867
        %v869 = vsel %vm816, %v868, 0.0
        %870 = vadd.xlane.f32.xlu0 %v869
        %v871 = vpop.xlane.xlu0 %870
        %v872 = vrcp.pop %v871
        %v873 = vmul.f32 %v868, %v872
        %v874 = vpack.c.bf16 %v873, %v873
        %875 = vrot.lane.b32.xlu0 %v812, 64
        %v876 = vpop.permute.xlu0 %875
        %v878 = vsel %vm816, %v874, 0
        %vm880 = vcmask 1043456
        %v882 = vsel %vm880, %v876, 0
        %884 = vmatprep.subr.bf16.mxu0 0
        %885 = vmatpush1.bf16.msra.mxu0 0
        %886 = vmatprep.subr.bf16.mxu0 0
        %887 = vmatpush1.bf16.msra.mxu0 0
        %888 = vmatprep.subr.bf16.mxu0 0
        %889 = vmatpush1.bf16.msra.mxu0 0
        %890 = vmatprep.subr.bf16.mxu0 0
        %891 = vmatpush1.bf16.msra.mxu0 0
        %892 = vmatprep.subr.bf16.mxu0 0
        %893 = vmatpush1.bf16.msra.mxu0 0
        %894 = vmatprep.subr.bf16.mxu0 0
        %895 = vmatpush1.bf16.msra.mxu0 0
        %896 = vmatprep.subr.bf16.mxu0 0
        %897 = vmatpush1.bf16.msra.mxu0 0
        %898 = vmatprep.subr.bf16.mxu0 0
        %899 = vmatpush1.bf16.msra.mxu0 %v882
        %900 = vmatprep.subr.bf16.mxu0 0
        %901 = vmatpush2.bf16.msra.mxu0 0
        %902 = vmatprep.subr.bf16.mxu0 0
        %903 = vmatpush2.bf16.msra.mxu0 0
        %904 = vmatprep.subr.bf16.mxu0 0
        %905 = vmatpush2.bf16.msra.mxu0 0
        %906 = vmatprep.subr.bf16.mxu0 0
        %907 = vmatpush2.bf16.msra.mxu0 0
        %908 = vmatprep.subr.bf16.mxu0 0
        %909 = vmatpush2.bf16.msra.mxu0 0
        %910 = vmatprep.subr.bf16.mxu0 0
        %911 = vmatpush2.bf16.msra.mxu0 0
        %912 = vmatprep.subr.bf16.mxu0 0
        %913 = vmatpush2.bf16.msra.mxu0 0
        %914 = vmatprep.subr.bf16.mxu0 0
        %915 = vmatpush2.bf16.msra.mxu0 0
        %916 = vmatprep.mubr.bf16.mxu0 0
        %917 = vmatmul.mubr.bf16.gmra.mxu0 %v878
        %v918 = vpop.f32.mrf.mxu0
        %v919 = vadd.f32 0.0, %v918
        %v920 = vpop.f32.mrf.mxu0
        %v921 = vpop.f32.mrf.mxu0
        %v922 = vpop.f32.mrf.mxu0
        %923 = vdwg.mxu0
        %925 = vrot.lane.b32.xlu0 %v811, 120
        %v926 = vpop.permute.xlu0 %925
        %927 = vrot.lane.b32.xlu0 %v812, 88
        %v928 = vpop.permute.xlu0 %927
        %v930 = vsel %vm816, %v926, 0
        %v933 = vsel %vm816, %v928, 0
        %935 = vmatprep.subr.bf16.mxu0 0
        %936 = vmatpush1.bf16.xpose.msra.mxu0 0
        %937 = vmatprep.subr.bf16.mxu0 0
        %938 = vmatpush1.bf16.xpose.msra.mxu0 0
        %939 = vmatprep.subr.bf16.mxu0 0
        %940 = vmatpush1.bf16.xpose.msra.mxu0 0
        %941 = vmatprep.subr.bf16.mxu0 0
        %942 = vmatpush1.bf16.xpose.msra.mxu0 0
        %943 = vmatprep.subr.bf16.mxu0 0
        %944 = vmatpush1.bf16.xpose.msra.mxu0 0
        %945 = vmatprep.subr.bf16.mxu0 0
        %946 = vmatpush1.bf16.xpose.msra.mxu0 0
        %947 = vmatprep.subr.bf16.mxu0 0
        %948 = vmatpush1.bf16.xpose.msra.mxu0 0
        %949 = vmatprep.subr.bf16.mxu0 0
        %950 = vmatpush1.bf16.xpose.msra.mxu0 %v933
        %951 = vmatprep.subr.bf16.mxu0 0
        %952 = vmatpush2.bf16.xpose.msra.mxu0 0
        %953 = vmatprep.subr.bf16.mxu0 0
        %954 = vmatpush2.bf16.xpose.msra.mxu0 0
        %955 = vmatprep.subr.bf16.mxu0 0
        %956 = vmatpush2.bf16.xpose.msra.mxu0 0
        %957 = vmatprep.subr.bf16.mxu0 0
        %958 = vmatpush2.bf16.xpose.msra.mxu0 0
        %959 = vmatprep.subr.bf16.mxu0 0
        %960 = vmatpush2.bf16.xpose.msra.mxu0 0
        %961 = vmatprep.subr.bf16.mxu0 0
        %962 = vmatpush2.bf16.xpose.msra.mxu0 0
        %963 = vmatprep.subr.bf16.mxu0 0
        %964 = vmatpush2.bf16.xpose.msra.mxu0 0
        %965 = vmatprep.subr.bf16.mxu0 0
        %966 = vmatpush2.bf16.xpose.msra.mxu0 0
        %967 = vmatprep.mubr.bf16.mxu0 0
        %968 = vmatmul.mubr.bf16.gmra.mxu0 %v930
        %v969 = vpop.f32.mrf.mxu0
        %v970 = vadd.f32 %v809, %v969
        %v971 = vpop.f32.mrf.mxu0
        %v972 = vpop.f32.mrf.mxu0
        %v973 = vpop.f32.mrf.mxu0
        %974 = vdwg.mxu0
        %v975 = vsel %vm816, %v970, -inf
        %976 = vmax.xlane.f32.xlu0 %v975
        %v977 = vpop.xlane.xlu0 %976
        %v978 = vsub.f32 %v970, %v977
        %v979 = vmul.f32 %v978, 1.442695
        %v980 = vpow.pop %v979
        %v981 = vsel %vm816, %v980, 0.0
        %982 = vadd.xlane.f32.xlu0 %v981
        %v983 = vpop.xlane.xlu0 %982
        %v984 = vrcp.pop %v983
        %v985 = vmul.f32 %v980, %v984
        %v986 = vpack.c.bf16 %v985, %v985
        %987 = vrot.lane.b32.xlu0 %v812, 56
        %v988 = vpop.permute.xlu0 %987
        %v990 = vsel %vm816, %v986, 0
        %v993 = vsel %vm880, %v988, 0
        %995 = vmatprep.subr.bf16.mxu0 0
        %996 = vmatpush1.bf16.msra.mxu0 0
        %997 = vmatprep.subr.bf16.mxu0 0
        %998 = vmatpush1.bf16.msra.mxu0 0
        %999 = vmatprep.subr.bf16.mxu0 0
        %1000 = vmatpush1.bf16.msra.mxu0 0
        %1001 = vmatprep.subr.bf16.mxu0 0
        %1002 = vmatpush1.bf16.msra.mxu0 0
        %1003 = vmatprep.subr.bf16.mxu0 0
        %1004 = vmatpush1.bf16.msra.mxu0 0
        %1005 = vmatprep.subr.bf16.mxu0 0
        %1006 = vmatpush1.bf16.msra.mxu0 0
        %1007 = vmatprep.subr.bf16.mxu0 0
        %1008 = vmatpush1.bf16.msra.mxu0 0
        %1009 = vmatprep.subr.bf16.mxu0 0
        %1010 = vmatpush1.bf16.msra.mxu0 %v993
        %1011 = vmatprep.subr.bf16.mxu0 0
        %1012 = vmatpush2.bf16.msra.mxu0 0
        %1013 = vmatprep.subr.bf16.mxu0 0
        %1014 = vmatpush2.bf16.msra.mxu0 0
        %1015 = vmatprep.subr.bf16.mxu0 0
        %1016 = vmatpush2.bf16.msra.mxu0 0
        %1017 = vmatprep.subr.bf16.mxu0 0
        %1018 = vmatpush2.bf16.msra.mxu0 0
        %1019 = vmatprep.subr.bf16.mxu0 0
        %1020 = vmatpush2.bf16.msra.mxu0 0
        %1021 = vmatprep.subr.bf16.mxu0 0
        %1022 = vmatpush2.bf16.msra.mxu0 0
        %1023 = vmatprep.subr.bf16.mxu0 0
        %1024 = vmatpush2.bf16.msra.mxu0 0
        %1025 = vmatprep.subr.bf16.mxu0 0
        %1026 = vmatpush2.bf16.msra.mxu0 0
        %1027 = vmatprep.mubr.bf16.mxu0 0
        %1028 = vmatmul.mubr.bf16.gmra.mxu0 %v990
        %v1029 = vpop.f32.mrf.mxu0
        %v1030 = vadd.f32 0.0, %v1029
        %v1031 = vpop.f32.mrf.mxu0
        %v1032 = vpop.f32.mrf.mxu0
        %v1033 = vpop.f32.mrf.mxu0
        %1034 = vdwg.mxu0
        %1035 = vrot.lane.b32.xlu0 %v811, 112
        %v1036 = vpop.permute.xlu0 %1035
        %1037 = vrot.lane.b32.xlu0 %v812, 80
        %v1038 = vpop.permute.xlu0 %1037
        %v1040 = vsel %vm816, %v1036, 0
        %v1043 = vsel %vm816, %v1038, 0
        %1045 = vmatprep.subr.bf16.mxu0 0
        %1046 = vmatpush1.bf16.xpose.msra.mxu0 0
        %1047 = vmatprep.subr.bf16.mxu0 0
        %1048 = vmatpush1.bf16.xpose.msra.mxu0 0
        %1049 = vmatprep.subr.bf16.mxu0 0
        %1050 = vmatpush1.bf16.xpose.msra.mxu0 0
        %1051 = vmatprep.subr.bf16.mxu0 0
        %1052 = vmatpush1.bf16.xpose.msra.mxu0 0
        %1053 = vmatprep.subr.bf16.mxu0 0
        %1054 = vmatpush1.bf16.xpose.msra.mxu0 0
        %1055 = vmatprep.subr.bf16.mxu0 0
        %1056 = vmatpush1.bf16.xpose.msra.mxu0 0
        %1057 = vmatprep.subr.bf16.mxu0 0
        %1058 = vmatpush1.bf16.xpose.msra.mxu0 0
        %1059 = vmatprep.subr.bf16.mxu0 0
        %1060 = vmatpush1.bf16.xpose.msra.mxu0 %v1043
        %1061 = vmatprep.subr.bf16.mxu0 0
        %1062 = vmatpush2.bf16.xpose.msra.mxu0 0
        %1063 = vmatprep.subr.bf16.mxu0 0
        %1064 = vmatpush2.bf16.xpose.msra.mxu0 0
        %1065 = vmatprep.subr.bf16.mxu0 0
        %1066 = vmatpush2.bf16.xpose.msra.mxu0 0
        %1067 = vmatprep.subr.bf16.mxu0 0
        %1068 = vmatpush2.bf16.xpose.msra.mxu0 0
        %1069 = vmatprep.subr.bf16.mxu0 0
        %1070 = vmatpush2.bf16.xpose.msra.mxu0 0
        %1071 = vmatprep.subr.bf16.mxu0 0
        %1072 = vmatpush2.bf16.xpose.msra.mxu0 0
        %1073 = vmatprep.subr.bf16.mxu0 0
        %1074 = vmatpush2.bf16.xpose.msra.mxu0 0
        %1075 = vmatprep.subr.bf16.mxu0 0
        %1076 = vmatpush2.bf16.xpose.msra.mxu0 0
        %1077 = vmatprep.mubr.bf16.mxu0 0
        %1078 = vmatmul.mubr.bf16.gmra.mxu0 %v1040
        %v1079 = vpop.f32.mrf.mxu0
        %v1080 = vadd.f32 %v809, %v1079
        %v1081 = vpop.f32.mrf.mxu0
        %v1082 = vpop.f32.mrf.mxu0
        %v1083 = vpop.f32.mrf.mxu0
        %1084 = vdwg.mxu0
        %v1085 = vsel %vm816, %v1080, -inf
        %1086 = vmax.xlane.f32.xlu0 %v1085
        %v1087 = vpop.xlane.xlu0 %1086
        %v1088 = vsub.f32 %v1080, %v1087
        %v1089 = vmul.f32 %v1088, 1.442695
        %v1090 = vpow.pop %v1089
        %v1091 = vsel %vm816, %v1090, 0.0
        %1092 = vadd.xlane.f32.xlu0 %v1091
        %v1093 = vpop.xlane.xlu0 %1092
        %v1094 = vrcp.pop %v1093
        %v1095 = vmul.f32 %v1090, %v1094
        %v1096 = vpack.c.bf16 %v1095, %v1095
        %1097 = vrot.lane.b32.xlu0 %v812, 48
        %v1098 = vpop.permute.xlu0 %1097
        %v1100 = vsel %vm816, %v1096, 0
        %v1103 = vsel %vm880, %v1098, 0
        %1105 = vmatprep.subr.bf16.mxu0 0
        %1106 = vmatpush1.bf16.msra.mxu0 0
        %1107 = vmatprep.subr.bf16.mxu0 0
        %1108 = vmatpush1.bf16.msra.mxu0 0
        %1109 = vmatprep.subr.bf16.mxu0 0
        %1110 = vmatpush1.bf16.msra.mxu0 0
        %1111 = vmatprep.subr.bf16.mxu0 0
        %1112 = vmatpush1.bf16.msra.mxu0 0
        %1113 = vmatprep.subr.bf16.mxu0 0
        %1114 = vmatpush1.bf16.msra.mxu0 0
        %1115 = vmatprep.subr.bf16.mxu0 0
        %1116 = vmatpush1.bf16.msra.mxu0 0
        %1117 = vmatprep.subr.bf16.mxu0 0
        %1118 = vmatpush1.bf16.msra.mxu0 0
        %1119 = vmatprep.subr.bf16.mxu0 0
        %1120 = vmatpush1.bf16.msra.mxu0 %v1103
        %1121 = vmatprep.subr.bf16.mxu0 0
        %1122 = vmatpush2.bf16.msra.mxu0 0
        %1123 = vmatprep.subr.bf16.mxu0 0
        %1124 = vmatpush2.bf16.msra.mxu0 0
        %1125 = vmatprep.subr.bf16.mxu0 0
        %1126 = vmatpush2.bf16.msra.mxu0 0
        %1127 = vmatprep.subr.bf16.mxu0 0
        %1128 = vmatpush2.bf16.msra.mxu0 0
        %1129 = vmatprep.subr.bf16.mxu0 0
        %1130 = vmatpush2.bf16.msra.mxu0 0
        %1131 = vmatprep.subr.bf16.mxu0 0
        %1132 = vmatpush2.bf16.msra.mxu0 0
        %1133 = vmatprep.subr.bf16.mxu0 0
        %1134 = vmatpush2.bf16.msra.mxu0 0
        %1135 = vmatprep.subr.bf16.mxu0 0
        %1136 = vmatpush2.bf16.msra.mxu0 0
        %1137 = vmatprep.mubr.bf16.mxu0 0
        %1138 = vmatmul.mubr.bf16.gmra.mxu0 %v1100
        %v1139 = vpop.f32.mrf.mxu0
        %v1140 = vadd.f32 0.0, %v1139
        %v1141 = vpop.f32.mrf.mxu0
        %v1142 = vpop.f32.mrf.mxu0
        %v1143 = vpop.f32.mrf.mxu0
        %1144 = vdwg.mxu0
        %1145 = vrot.lane.b32.xlu0 %v811, 104
        %v1146 = vpop.permute.xlu0 %1145
        %1147 = vrot.lane.b32.xlu0 %v812, 72
        %v1148 = vpop.permute.xlu0 %1147
        %v1150 = vsel %vm816, %v1146, 0
        %v1153 = vsel %vm816, %v1148, 0
        %1155 = vmatprep.subr.bf16.mxu0 0
        %1156 = vmatpush1.bf16.xpose.msra.mxu0 0
        %1157 = vmatprep.subr.bf16.mxu0 0
        %1158 = vmatpush1.bf16.xpose.msra.mxu0 0
        %1159 = vmatprep.subr.bf16.mxu0 0
        %1160 = vmatpush1.bf16.xpose.msra.mxu0 0
        %1161 = vmatprep.subr.bf16.mxu0 0
        %1162 = vmatpush1.bf16.xpose.msra.mxu0 0
        %1163 = vmatprep.subr.bf16.mxu0 0
        %1164 = vmatpush1.bf16.xpose.msra.mxu0 0
        %1165 = vmatprep.subr.bf16.mxu0 0
        %1166 = vmatpush1.bf16.xpose.msra.mxu0 0
        %1167 = vmatprep.subr.bf16.mxu0 0
        %1168 = vmatpush1.bf16.xpose.msra.mxu0 0
        %1169 = vmatprep.subr.bf16.mxu0 0
        %1170 = vmatpush1.bf16.xpose.msra.mxu0 %v1153
        %1171 = vmatprep.subr.bf16.mxu0 0
        %1172 = vmatpush2.bf16.xpose.msra.mxu0 0
        %1173 = vmatprep.subr.bf16.mxu0 0
        %1174 = vmatpush2.bf16.xpose.msra.mxu0 0
        %1175 = vmatprep.subr.bf16.mxu0 0
        %1176 = vmatpush2.bf16.xpose.msra.mxu0 0
        %1177 = vmatprep.subr.bf16.mxu0 0
        %1178 = vmatpush2.bf16.xpose.msra.mxu0 0
        %1179 = vmatprep.subr.bf16.mxu0 0
        %1180 = vmatpush2.bf16.xpose.msra.mxu0 0
        %1181 = vmatprep.subr.bf16.mxu0 0
        %1182 = vmatpush2.bf16.xpose.msra.mxu0 0
        %1183 = vmatprep.subr.bf16.mxu0 0
        %1184 = vmatpush2.bf16.xpose.msra.mxu0 0
        %1185 = vmatprep.subr.bf16.mxu0 0
        %1186 = vmatpush2.bf16.xpose.msra.mxu0 0
        %1187 = vmatprep.mubr.bf16.mxu0 0
        %1188 = vmatmul.mubr.bf16.gmra.mxu0 %v1150
        %v1189 = vpop.f32.mrf.mxu0
        %v1190 = vadd.f32 %v809, %v1189
        %v1191 = vpop.f32.mrf.mxu0
        %v1192 = vpop.f32.mrf.mxu0
        %v1193 = vpop.f32.mrf.mxu0
        %1194 = vdwg.mxu0
        %v1195 = vsel %vm816, %v1190, -inf
        %1196 = vmax.xlane.f32.xlu0 %v1195
        %v1197 = vpop.xlane.xlu0 %1196
        %v1198 = vsub.f32 %v1190, %v1197
        %v1199 = vmul.f32 %v1198, 1.442695
        %v1200 = vpow.pop %v1199
        %v1201 = vsel %vm816, %v1200, 0.0
        %1202 = vadd.xlane.f32.xlu0 %v1201
        %v1203 = vpop.xlane.xlu0 %1202
        %v1204 = vrcp.pop %v1203
        %v1205 = vmul.f32 %v1200, %v1204
        %v1206 = vpack.c.bf16 %v1205, %v1205
        %1207 = vrot.lane.b32.xlu0 %v812, 40
        %v1208 = vpop.permute.xlu0 %1207
        %v1210 = vsel %vm816, %v1206, 0
        %v1213 = vsel %vm880, %v1208, 0
        %1215 = vmatprep.subr.bf16.mxu0 0
        %1216 = vmatpush1.bf16.msra.mxu0 0
        %1217 = vmatprep.subr.bf16.mxu0 0
        %1218 = vmatpush1.bf16.msra.mxu0 0
        %1219 = vmatprep.subr.bf16.mxu0 0
        %1220 = vmatpush1.bf16.msra.mxu0 0
        %1221 = vmatprep.subr.bf16.mxu0 0
        %1222 = vmatpush1.bf16.msra.mxu0 0
        %1223 = vmatprep.subr.bf16.mxu0 0
        %1224 = vmatpush1.bf16.msra.mxu0 0
        %1225 = vmatprep.subr.bf16.mxu0 0
        %1226 = vmatpush1.bf16.msra.mxu0 0
        %1227 = vmatprep.subr.bf16.mxu0 0
        %1228 = vmatpush1.bf16.msra.mxu0 0
        %1229 = vmatprep.subr.bf16.mxu0 0
        %1230 = vmatpush1.bf16.msra.mxu0 %v1213
        %1231 = vmatprep.subr.bf16.mxu0 0
        %1232 = vmatpush2.bf16.msra.mxu0 0
        %1233 = vmatprep.subr.bf16.mxu0 0
        %1234 = vmatpush2.bf16.msra.mxu0 0
        %1235 = vmatprep.subr.bf16.mxu0 0
        %1236 = vmatpush2.bf16.msra.mxu0 0
        %1237 = vmatprep.subr.bf16.mxu0 0
        %1238 = vmatpush2.bf16.msra.mxu0 0
        %1239 = vmatprep.subr.bf16.mxu0 0
        %1240 = vmatpush2.bf16.msra.mxu0 0
        %1241 = vmatprep.subr.bf16.mxu0 0
        %1242 = vmatpush2.bf16.msra.mxu0 0
        %1243 = vmatprep.subr.bf16.mxu0 0
        %1244 = vmatpush2.bf16.msra.mxu0 0
        %1245 = vmatprep.subr.bf16.mxu0 0
        %1246 = vmatpush2.bf16.msra.mxu0 0
        %1247 = vmatprep.mubr.bf16.mxu0 0
        %1248 = vmatmul.mubr.bf16.gmra.mxu0 %v1210
        %v1249 = vpop.f32.mrf.mxu0
        %v1250 = vadd.f32 0.0, %v1249
        %v1251 = vpop.f32.mrf.mxu0
        %v1252 = vpop.f32.mrf.mxu0
        %v1253 = vpop.f32.mrf.mxu0
        %1254 = vdwg.mxu0
        %1256 = vrot.lane.b32.xlu0 %v1030, 8
        %v1257 = vpop.permute.xlu0 %1256
        %1260 = vrot.lane.b32.xlu0 %v1140, 16
        %v1261 = vpop.permute.xlu0 %1260
        %1264 = vrot.lane.b32.xlu0 %v1250, 24
        %v1265 = vpop.permute.xlu0 %1264
        %v1267 = vsel %vm816, %v919, %v1257
        %vm1268 = vcmask 130048
        %v1269 = vsel %vm1268, %v1267, %v1261
        %vm1270 = vcmask 195584
        %v1271 = vsel %vm1270, %v1269, %v1265
        %v1272 = vpack.c.bf16 %v1271, %v1271
        %v1273 = vld [vmem:[%s668] sm:$0xf]
        %v1274 = vld [vmem:[%s668 + $0x4] sm:$0xf]
        %v1275 = vld [vmem:[%s668 + $0x8] sm:$0xf]
        %v1276 = vld [vmem:[%s668 + $0xc] sm:$0xf]
        %v1281 = vunpack.c.l.b16 %v1273
        %v1282 = vunpack.c.l.b16 %v1274
        %v1283 = vunpack.c.l.b16 %v1275
        %v1284 = vunpack.c.l.b16 %v1276
        %v1285 = vpack.c.b16 %v1282, %v1281
        %v1286 = vpack.c.b16 %v1284, %v1283
        %v1290 = vsel %vm713, %v1272, 0
        %1292 = vmatprep.subr.bf16.mxu0 0
        %1293 = vmatpush1.bf16.msra.mxu0 0
        %1294 = vmatprep.subr.bf16.mxu0 0
        %1295 = vmatpush1.bf16.msra.mxu0 0
        %1296 = vmatprep.subr.bf16.mxu0 0
        %1297 = vmatpush1.bf16.msra.mxu0 0
        %1298 = vmatprep.subr.bf16.mxu0 0
        %1299 = vmatpush1.bf16.msra.mxu0 0
        %1300 = vmatprep.subr.bf16.mxu0 0
        %1301 = vmatpush1.bf16.msra.mxu0 0
        %1302 = vmatprep.subr.bf16.mxu0 0
        %1303 = vmatpush1.bf16.msra.mxu0 0
        %1304 = vmatprep.subr.bf16.mxu0 0
        %1305 = vmatpush1.bf16.msra.mxu0 %v1286
        %1306 = vmatprep.subr.bf16.mxu0 0
        %1307 = vmatpush1.bf16.msra.mxu0 %v1285
        %1308 = vmatprep.subr.bf16.mxu0 0
        %1309 = vmatpush2.bf16.msra.mxu0 0
        %1310 = vmatprep.subr.bf16.mxu0 0
        %1311 = vmatpush2.bf16.msra.mxu0 0
        %1312 = vmatprep.subr.bf16.mxu0 0
        %1313 = vmatpush2.bf16.msra.mxu0 0
        %1314 = vmatprep.subr.bf16.mxu0 0
        %1315 = vmatpush2.bf16.msra.mxu0 0
        %1316 = vmatprep.subr.bf16.mxu0 0
        %1317 = vmatpush2.bf16.msra.mxu0 0
        %1318 = vmatprep.subr.bf16.mxu0 0
        %1319 = vmatpush2.bf16.msra.mxu0 0
        %1320 = vmatprep.subr.bf16.mxu0 0
        %1321 = vmatpush2.bf16.msra.mxu0 0
        %1322 = vmatprep.subr.bf16.mxu0 0
        %1323 = vmatpush2.bf16.msra.mxu0 0
        %1324 = vmatprep.mubr.bf16.mxu0 0
        %1325 = vmatmul.mubr.bf16.gmra.mxu0 %v1290
        %v1326 = vpop.f32.mrf.mxu0
        %v1327 = vadd.f32 0.0, %v1326
        %v1328 = vpop.f32.mrf.mxu0
        %v1329 = vpop.f32.mrf.mxu0
        %v1330 = vpop.f32.mrf.mxu0
        %1331 = vdwg.mxu0
        %v1332 = vadd.f32 %v710, %v1327
        %v1333 = vld [vmem:[%s671] sm:$0x1]
        %v1335 = vlaneseq
        %v1336 = vshrl.u32 %v1335, 7
        %v1337 = vsub.s32 0, %v1336
        %v1338 = vrot.slane %v1333, %v1337
        %v1340 = vadd.f32 %v1332, %v1338
        %v1341 = vld [vmem:[%s674] sm:$0x1]
        %v1342 = vld [vmem:[%s677] sm:$0x1]
        %v1343 = vsel %vm713, %v1340, 0.0
        %1344 = vadd.xlane.f32.xlu0 %v1343
        %v1345 = vpop.xlane.xlu0 %1344
        %v1346 = vmul.f32 %v1345, %v717
        %v1347 = vsub.f32 %v1340, %v1346
        %v1348 = vmul.f32 %v1347, %v1347
        %v1349 = vsel %vm713, %v1348, 0.0
        %1350 = vadd.xlane.f32.xlu0 %v1349
        %v1351 = vpop.xlane.xlu0 %1350
        %v1352 = vmul.f32 %v1351, %v717
        %v1353 = vadd.f32 %v1352, 1e-05
        %v1354 = vrsqrt.pop %v1353
        %v1355 = vmul.f32 %v1347, %v1354
        %v1357 = vlaneseq
        %v1358 = vshrl.u32 %v1357, 7
        %v1359 = vsub.s32 0, %v1358
        %v1360 = vrot.slane %v1341, %v1359
        %v1362 = vmul.f32 %v1355, %v1360
        %v1364 = vlaneseq
        %v1365 = vshrl.u32 %v1364, 7
        %v1366 = vsub.s32 0, %v1365
        %v1367 = vrot.slane %v1342, %v1366
        %v1369 = vadd.f32 %v1362, %v1367
        %v1370 = vpack.c.bf16 %v1369, %v1369
        %v1371 = vld [vmem:[%s682] sm:$0xf]
        %v1372 = vld [vmem:[%s682 + $0x4] sm:$0xf]
        %v1373 = vld [vmem:[%s682 + $0x8] sm:$0xf]
        %v1374 = vld [vmem:[%s682 + $0xc] sm:$0xf]
        %v1375 = vld [vmem:[%s685] sm:$0x1]
        %v1377 = vlaneseq
        %v1378 = vshrl.u32 %v1377, 7
        %v1379 = vsub.s32 0, %v1378
        %v1380 = vrot.slane %v1375, %v1379
        %v1386 = vunpack.c.l.b16 %v1371
        %v1387 = vunpack.c.l.b16 %v1372
        %v1388 = vunpack.c.l.b16 %v1373
        %v1389 = vunpack.c.l.b16 %v1374
        %v1390 = vpack.c.b16 %v1387, %v1386
        %v1391 = vpack.c.b16 %v1389, %v1388
        %v1395 = vsel %vm713, %v1370, 0
        %1397 = vmatprep.subr.bf16.mxu0 0
        %1398 = vmatpush1.bf16.msra.mxu0 0
        %1399 = vmatprep.subr.bf16.mxu0 0
        %1400 = vmatpush1.bf16.msra.mxu0 0
        %1401 = vmatprep.subr.bf16.mxu0 0
        %1402 = vmatpush1.bf16.msra.mxu0 0
        %1403 = vmatprep.subr.bf16.mxu0 0
        %1404 = vmatpush1.bf16.msra.mxu0 0
        %1405 = vmatprep.subr.bf16.mxu0 0
        %1406 = vmatpush1.bf16.msra.mxu0 0
        %1407 = vmatprep.subr.bf16.mxu0 0
        %1408 = vmatpush1.bf16.msra.mxu0 0
        %1409 = vmatprep.subr.bf16.mxu0 0
        %1410 = vmatpush1.bf16.msra.mxu0 %v1391
        %1411 = vmatprep.subr.bf16.mxu0 0
        %1412 = vmatpush1.bf16.msra.mxu0 %v1390
        %1413 = vmatprep.subr.bf16.mxu0 0
        %1414 = vmatpush2.bf16.msra.mxu0 0
        %1415 = vmatprep.subr.bf16.mxu0 0
        %1416 = vmatpush2.bf16.msra.mxu0 0
        %1417 = vmatprep.subr.bf16.mxu0 0
        %1418 = vmatpush2.bf16.msra.mxu0 0
        %1419 = vmatprep.subr.bf16.mxu0 0
        %1420 = vmatpush2.bf16.msra.mxu0 0
        %1421 = vmatprep.subr.bf16.mxu0 0
        %1422 = vmatpush2.bf16.msra.mxu0 0
        %1423 = vmatprep.subr.bf16.mxu0 0
        %1424 = vmatpush2.bf16.msra.mxu0 0
        %1425 = vmatprep.subr.bf16.mxu0 0
        %1426 = vmatpush2.bf16.msra.mxu0 0
        %1427 = vmatprep.subr.bf16.mxu0 0
        %1428 = vmatpush2.bf16.msra.mxu0 0
        %1429 = vmatprep.mubr.bf16.mxu0 0
        %1430 = vmatmul.mubr.bf16.gmra.mxu0 %v1395
        %v1431 = vpop.f32.mrf.mxu0
        %v1432 = vadd.f32 %v1380, %v1431
        %v1433 = vpop.f32.mrf.mxu0
        %v1434 = vpop.f32.mrf.mxu0
        %v1435 = vpop.f32.mrf.mxu0
        %1436 = vdwg.mxu0
        %v1437 = vmul.f32 %v1432, 0.5
        %v1438 = vmul.f32 %v1432, 0.044715
        %v1439 = vmul.f32 %v1438, %v1432
        %v1440 = vmul.f32 %v1439, %v1432
        %v1441 = vadd.f32 %v1432, %v1440
        %v1442 = vmul.f32 %v1441, 0.7978846
        %v1443 = vtanh.pop %v1442
        %v1444 = vadd.f32 %v1443, 1.0
        %v1445 = vmul.f32 %v1437, %v1444
        %v1446 = vpack.c.bf16 %v1445, %v1445
        %v1447 = vld [vmem:[%s690] sm:$0xf]
        %v1448 = vld [vmem:[%s690 + $0x4] sm:$0xf]
        %v1449 = vld [vmem:[%s690 + $0x8] sm:$0xf]
        %v1450 = vld [vmem:[%s690 + $0xc] sm:$0xf]
        %v1451 = vld [vmem:[%s690 + $0x10] sm:$0xf]
        %v1452 = vld [vmem:[%s690 + $0x14] sm:$0xf]
        %v1453 = vld [vmem:[%s690 + $0x18] sm:$0xf]
        %v1454 = vld [vmem:[%s690 + $0x1c] sm:$0xf]
        %v1455 = vld [vmem:[%s690 + $0x20] sm:$0xf]
        %v1456 = vld [vmem:[%s690 + $0x24] sm:$0xf]
        %v1457 = vld [vmem:[%s690 + $0x28] sm:$0xf]
        %v1458 = vld [vmem:[%s690 + $0x2c] sm:$0xf]
        %v1459 = vld [vmem:[%s690 + $0x30] sm:$0xf]
        %v1460 = vld [vmem:[%s690 + $0x34] sm:$0xf]
        %v1461 = vld [vmem:[%s690 + $0x38] sm:$0xf]
        %v1462 = vld [vmem:[%s690 + $0x3c] sm:$0xf]
        %v1479 = vunpack.c.l.b16 %v1447
        %v1480 = vunpack.c.l.b16 %v1448
        %v1481 = vunpack.c.l.b16 %v1449
        %v1482 = vunpack.c.l.b16 %v1450
        %v1483 = vunpack.c.l.b16 %v1451
        %v1484 = vunpack.c.l.b16 %v1452
        %v1485 = vunpack.c.l.b16 %v1453
        %v1486 = vunpack.c.l.b16 %v1454
        %v1487 = vunpack.c.l.b16 %v1455
        %v1488 = vunpack.c.l.b16 %v1456
        %v1489 = vunpack.c.l.b16 %v1457
        %v1490 = vunpack.c.l.b16 %v1458
        %v1491 = vunpack.c.l.b16 %v1459
        %v1492 = vunpack.c.l.b16 %v1460
        %v1493 = vunpack.c.l.b16 %v1461
        %v1494 = vunpack.c.l.b16 %v1462
        %v1495 = vpack.c.b16 %v1480, %v1479
        %v1496 = vpack.c.b16 %v1482, %v1481
        %v1497 = vpack.c.b16 %v1484, %v1483
        %v1498 = vpack.c.b16 %v1486, %v1485
        %v1499 = vpack.c.b16 %v1488, %v1487
        %v1500 = vpack.c.b16 %v1490, %v1489
        %v1501 = vpack.c.b16 %v1492, %v1491
        %v1502 = vpack.c.b16 %v1494, %v1493
        %1511 = vmatprep.subr.bf16.mxu0 0
        %1512 = vmatpush1.bf16.msra.mxu0 %v1502
        %1513 = vmatprep.subr.bf16.mxu0 0
        %1514 = vmatpush1.bf16.msra.mxu0 %v1501
        %1515 = vmatprep.subr.bf16.mxu0 0
        %1516 = vmatpush1.bf16.msra.mxu0 %v1500
        %1517 = vmatprep.subr.bf16.mxu0 0
        %1518 = vmatpush1.bf16.msra.mxu0 %v1499
        %1519 = vmatprep.subr.bf16.mxu0 0
        %1520 = vmatpush1.bf16.msra.mxu0 %v1498
        %1521 = vmatprep.subr.bf16.mxu0 0
        %1522 = vmatpush1.bf16.msra.mxu0 %v1497
        %1523 = vmatprep.subr.bf16.mxu0 0
        %1524 = vmatpush1.bf16.msra.mxu0 %v1496
        %1525 = vmatprep.subr.bf16.mxu0 0
        %1526 = vmatpush1.bf16.msra.mxu0 %v1495
        %1527 = vmatprep.subr.bf16.mxu0 0
        %1528 = vmatpush2.bf16.msra.mxu0 0
        %1529 = vmatprep.subr.bf16.mxu0 0
        %1530 = vmatpush2.bf16.msra.mxu0 0
        %1531 = vmatprep.subr.bf16.mxu0 0
        %1532 = vmatpush2.bf16.msra.mxu0 0
        %1533 = vmatprep.subr.bf16.mxu0 0
        %1534 = vmatpush2.bf16.msra.mxu0 0
        %1535 = vmatprep.subr.bf16.mxu0 0
        %1536 = vmatpush2.bf16.msra.mxu0 0
        %1537 = vmatprep.subr.bf16.mxu0 0
        %1538 = vmatpush2.bf16.msra.mxu0 0
        %1539 = vmatprep.subr.bf16.mxu0 0
        %1540 = vmatpush2.bf16.msra.mxu0 0
        %1541 = vmatprep.subr.bf16.mxu0 0
        %1542 = vmatpush2.bf16.msra.mxu0 0
        %1543 = vmatprep.mubr.bf16.mxu0 0
        %1544 = vmatmul.mubr.bf16.gmra.mxu0 %v1446
        %v1545 = vpop.f32.mrf.mxu0
        %v1546 = vadd.f32 0.0, %v1545
        %v1547 = vpop.f32.mrf.mxu0
        %v1548 = vpop.f32.mrf.mxu0
        %v1549 = vpop.f32.mrf.mxu0
        %1550 = vdwg.mxu0
        %v1551 = vadd.f32 %v1340, %v1546
        %v1552 = vld [vmem:[%s693] sm:$0x1]
        %v1554 = vlaneseq
        %v1555 = vshrl.u32 %v1554, 7
        %v1556 = vsub.s32 0, %v1555
        %v1557 = vrot.slane %v1552, %v1556
        %v1559 = vadd.f32 %v1551, %v1557
        %p1560 = scmp.lt.s32.totalorder %s34, 1
        // Predicated region
        $region85: #{tpu_custom_call.1} parent=79 // pred_check
          %p1561 = pneg %p1560
        $region86: #{tpu_custom_call.1} parent=79 // pred_check_branch
          %1563 = sbr.rel (%p1561) target = $region88
        $region87: #{tpu_custom_call.1} parent=79 // pred_region
          %1564 = vst.msk [vmem:[%s645] sm:$0xff] %vm713, %v1559
        $region88: #{tpu_custom_call.1} parent=79 // pred_fallthru
          _
        %p1565 = scmp.eq.s32.totalorder %s34, 1
        // Predicated region
        $region89: #{tpu_custom_call.1} parent=79 // pred_check
          %p1566 = pneg %p1565
        $region90: #{tpu_custom_call.1} parent=79 // pred_check_branch
          %1568 = sbr.rel (%p1566) target = $region92
        $region91: #{tpu_custom_call.1} parent=79 // pred_region
          %v1569 = vld [vmem:[%s13] sm:$0x1]
          %v1570 = vld [vmem:[%s14] sm:$0x1]
          %v1571 = vsel %vm713, %v1559, 0.0
          %1572 = vadd.xlane.f32.xlu0 %v1571
          %v1573 = vpop.xlane.xlu0 %1572
          %v1574 = vmul.f32 %v1573, %v717
          %v1575 = vsub.f32 %v1559, %v1574
          %v1576 = vmul.f32 %v1575, %v1575
          %v1577 = vsel %vm713, %v1576, 0.0
          %1578 = vadd.xlane.f32.xlu0 %v1577
          %v1579 = vpop.xlane.xlu0 %1578
          %v1580 = vmul.f32 %v1579, %v717
          %v1581 = vadd.f32 %v1580, 1e-05
          %v1582 = vrsqrt.pop %v1581
          %v1583 = vmul.f32 %v1575, %v1582
          %v1585 = vlaneseq
          %v1586 = vshrl.u32 %v1585, 7
          %v1587 = vsub.s32 0, %v1586
          %v1588 = vrot.slane %v1569, %v1587
          %v1590 = vmul.f32 %v1583, %v1588
          %v1592 = vlaneseq
          %v1593 = vshrl.u32 %v1592, 7
          %v1594 = vsub.s32 0, %v1593
          %v1595 = vrot.slane %v1570, %v1594
          %v1597 = vadd.f32 %v1590, %v1595
          %1598 = vst.msk [vmem:[%s645] sm:$0xff] %vm713, %v1597
        $region92: #{tpu_custom_call.1} parent=79 // pred_fallthru
          _
        %s1599 = sand.u32 %s429, 1
        %s1600 = scalar_lea.sflag [#allocation4], %s1599
        %s1601 = sand.u32 %s429, 1
        %s1602 = smul.addr %s1601, 8
        %s1603 = scalar_lea.vmem [#allocation3], %s1602
        // Predicated region
        $region93: #{tpu_custom_call.1} parent=79 // pred_check
          %p1604 = pneg %p439
        $region94: #{tpu_custom_call.1} parent=79 // pred_check_branch
          %1606 = sbr.rel (%p1604) target = $region96
        $region95: #{tpu_custom_call.1} parent=79 // pred_region
          %s1608 = ssub.s32 128, 128
          %1609 = vsyncadd %s1600, %s1608
          %s1610 = smul.addr %s33, 128
          %s1611 = scalar_lea.hbm %s15, %s1610
          %s1613 = sshll.u32 %s1603, 4
          %s1614 = int_to_ptr.vmem [resolvable:$true] %s1613
          %1616 = dma.vmem_to_hbm [thread:$0]  %s1614, 128, %s1611, %s1600
        $region96: #{tpu_custom_call.1} parent=79 // pred_fallthru
          _
      $region80: #{tpu_custom_call.1} parent=5 // pred_fallthru
        _
      %p1617 = scmp.le.s32.totalorder 2, %s24
      // Predicated region
      $region97: #{tpu_custom_call.1} parent=5 // pred_check
        %p1618 = pneg %p1617
      $region98: #{tpu_custom_call.1} parent=5 // pred_check_branch
        %1620 = sbr.rel (%p1618) target = $region100
      $region99: #{tpu_custom_call.1} parent=5 // pred_region
        %s1621 = ssub.s32 %s24, 2
        // Predicated region
        $region101: #{tpu_custom_call.1} parent=99 // pred_check
          %p1622 = pneg %p445
        $region102: #{tpu_custom_call.1} parent=99 // pred_check_branch
          %1624 = sbr.rel (%p1622) target = $region104
        $region103: #{tpu_custom_call.1} parent=99 // pred_region
          %s1625 = sand.u32 %s430, 1
          %s1626 = scalar_lea.sflag [#allocation4], %s1625
          %s1627 = sand.u32 %s430, 1
          %s1628 = smul.addr %s1627, 8
          %s1629 = scalar_lea.vmem [#allocation3], %s1628
          %1630 = dma.done %s1626, 128
        $region104: #{tpu_custom_call.1} parent=99 // pred_fallthru
          _
      $region100: #{tpu_custom_call.1} parent=5 // pred_fallthru
        _
    $region6: #{tpu_custom_call.1} parent=1 // loop_footer
      %s28 = sadd.s32 1, %s24
    $region7: #{tpu_custom_call.1} parent=1 // loop_footer_branch
      %23 = sbr.rel target = $region3
    $region8: #{tpu_custom_call.1} parent=1 // loop_exit
      _
    %1631 = vsyncpa [#allocation4], 1
    %s1632 = scalar_lea.sflag [#allocation4], 1
    %1633 = vsyncpa %s1632, 1

</llo_original>
